<compile_context>
chip_gen: v7x
topology: tpu7x:2x2x1
jax: 0.10.0
libtpu: 0.0.40
codegen_flags: <defaults>
</compile_context>

<pallas_src>
import math

import jax
import jax.numpy as jnp
from jax.experimental import pallas as pl
from jax.experimental.pallas import tpu as pltpu


EPS = 1e-8


def _round_up(v: int, m: int) -> int:
    return (v + m - 1) // m * m


def _vmem_capacity_bytes() -> int:
    """Best-effort per-core VMEM capacity; conservative fallback (v7x = 64 MiB/TC)."""
    try:
        cap = int(pltpu.get_tpu_info().vmem_capacity_bytes)
        return min(max(cap, 32 * 1024 * 1024), 128 * 1024 * 1024)
    except Exception:
        return 64 * 1024 * 1024


def _onlinehd_kernel(x_ref, w_enc_ref, b_ref, half_sinb_ref, w_cls_ref,
                     cls_mag_ref, out_ref, nsq_ref):
    # x_ref:         (TB, Fp)   batch tile (features zero-padded)
    # w_enc_ref:     (Fp, Dt)   2 * Sinusoid weight^T, D-tile k
    # b_ref:         (1,  Dt)   Sinusoid bias, D-tile k
    # half_sinb_ref: (1,  Dt)   0.5 * sin(bias), precomputed, D-tile k
    # w_cls_ref:     (Dt, Cp)   Centroid weight^T, D-tile k
    # cls_mag_ref:   (1,  Cp)   per-class L2 norms (over the true D)
    # out_ref:       (TB, Cp)   f32; running enc @ W_cls^T, normalized at last k
    # nsq_ref:       (TB, 1)    f32 scratch: running ||enc||^2
    k = pl.program_id(1)

    @pl.when(k == 0)
    def _init():
        out_ref[...] = jnp.zeros_like(out_ref)
        nsq_ref[...] = jnp.zeros_like(nsq_ref)

    # --- Sinusoid encoder chunk (MXU matmul + single sin on the EUP) ---
    # W_enc^T is pre-scaled by 2 in the wrapper, so proj == 2 * (x @ W_enc^T).
    proj = jnp.dot(x_ref[...], w_enc_ref[...],
                   preferred_element_type=jnp.float32)                  # (TB, Dt)
    # cos(p + b) * sin(p) == 0.5*sin(2p + b) - 0.5*sin(b)
    enc = 0.5 * jnp.sin(proj + b_ref[...]) - half_sinb_ref[...]         # (TB, Dt)

    # --- Centroid partial dot (accumulated in the resident output block) ---
    out_ref[...] += jnp.dot(enc.astype(w_cls_ref.dtype), w_cls_ref[...],
                            preferred_element_type=jnp.float32)         # (TB, Cp)
    nsq_ref[...] += jnp.sum(enc * enc, axis=-1, keepdims=True)          # (TB, 1)

    @pl.when(k == pl.num_programs(1) - 1)
    def _finalize():
        enc_mag = jnp.sqrt(nsq_ref[...])                                # (TB, 1)
        # Same semantics as torch: clamp(||enc|| * ||w||, min=eps); zero
        # centroids (and padded classes) therefore still produce score 0.
        mag = jnp.maximum(enc_mag * cls_mag_ref[...], EPS)              # (TB, Cp)
        out_ref[...] = out_ref[...] / mag


def onlinehd_forward(x, w_enc, b_enc, w_cls, *, batch_tile=1024, d_tile=1024,
                     compute_dtype=jnp.bfloat16, allow_weight_residency=True):
    """Pallas OnlineHD.forward: returns (batch, n_classes) cosine scores.

    x:     (N, F)  input samples
    w_enc: (D, F)  Sinusoid.weight
    b_enc: (1, D)  Sinusoid.bias
    w_cls: (C, D)  Centroid.weight

    compute_dtype controls only the two matmul operand dtypes (bf16 default,
    MXU-native on v6e/v7x); trig, norms and accumulation are always f32.
    """
    n, f = x.shape
    d, f2 = w_enc.shape
    c, d2 = w_cls.shape
    assert f2 == f and d2 == d and b_enc.shape == (1, d)

    cdt = jnp.dtype(compute_dtype)
    itemsize = cdt.itemsize
    # Sublane packing: f32 -> 8, bf16 -> 16, int8/fp8 -> 32.
    sub = {4: 8, 2: 16, 1: 32}.get(itemsize, 8)

    # Padded geometry (MXU + lane-dense friendly).
    f_pad = _round_up(f, 128)
    c_pad = _round_up(c, 128)
    d_full = _round_up(d, 128)

    vmem_cap = _vmem_capacity_bytes()
    vmem_budget = int(vmem_cap * 0.70)   # tile-fitting budget
    vmem_limit = int(vmem_cap * 0.85)    # compiler scoped-VMEM ceiling

    def footprint(tb, dt):
        # 2x = BlockSpec double-buffering; elementwise temporaries counted 4x.
        return (2 * tb * f_pad * itemsize          # x tile
                + 2 * f_pad * dt * itemsize        # W_enc^T tile
                + 2 * dt * c_pad * itemsize        # W_cls^T tile
                + 2 * 2 * dt * 4                   # bias, 0.5*sin(bias)
                + 2 * c_pad * 4                    # ||W_cls||
                + 2 * tb * c_pad * 4               # output block
                + tb * 4                           # ||enc||^2 scratch
                + 4 * tb * dt * 4)                 # proj/enc/enc^2/cast temporaries

    batch_tile = max(sub, _round_up(min(batch_tile, n), sub))

    # Full weight residency when it fits the budget: the D grid axis collapses
    # to 1 and W_enc^T / W_cls^T are DMA'd from HBM exactly once.
    if allow_weight_residency and footprint(batch_tile, d_full) <= vmem_budget:
        d_tile = d_full
    else:
        d_tile = max(128, _round_up(min(d_tile, d), 128))

    # Shrink tiles until the footprint fits the budget.
    while footprint(batch_tile, d_tile) > vmem_budget and batch_tile > sub:
        batch_tile = max(sub, _round_up(batch_tile // 2, sub))
    while footprint(batch_tile, d_tile) > vmem_budget and d_tile > 128:
        d_tile = max(128, _round_up(d_tile // 2, 128))
    assert footprint(batch_tile, d_tile) <= vmem_budget, (
        "OnlineHD tiles do not fit the VMEM budget; reduce batch_tile/d_tile")

    d_resident = d_tile >= d_full

    # v7x megacore: when weights are resident (so splitting the batch axis adds
    # no HBM traffic), make sure the 'parallel' batch axis has >= 2 tiles so
    # both TensorCores get work.
    if d_resident and batch_tile >= n:
        bt2 = _round_up(-(-n // 2), sub)
        if sub <= bt2 < n:
            batch_tile = bt2

    d_pad = _round_up(d, d_tile)
    n_pad = _round_up(n, batch_tile)
    grid = (n_pad // batch_tile, d_pad // d_tile)

    # Wrapper-side layout plumbing: pre-transpose, pre-scale, zero-pad.
    x_p = jnp.zeros((n_pad, f_pad), cdt).at[:n, :f].set(x.astype(cdt))
    w_enc_t = jnp.zeros((f_pad, d_pad), cdt).at[:f, :d].set(
        (2.0 * w_enc.T).astype(cdt))                       # exact *2 (power of two)
    b_p = jnp.zeros((1, d_pad), jnp.float32).at[:, :d].set(b_enc.astype(jnp.float32))
    half_sinb = 0.5 * jnp.sin(b_p)                         # padded cols stay 0
    w_cls_t = jnp.zeros((d_pad, c_pad), cdt).at[:d, :c].set(w_cls.T.astype(cdt))
    cls_mag = jnp.zeros((1, c_pad), jnp.float32).at[0, :c].set(
        jnp.sqrt(jnp.sum(w_cls.astype(jnp.float32) ** 2, axis=1)))

    weight_reads = 1 if d_resident else grid[0]
    bytes_accessed = int(
        n_pad * f_pad * itemsize                                  # x (read once)
        + weight_reads * (f_pad * d_pad + d_pad * c_pad) * itemsize
        + 2 * d_pad * 4 + c_pad * 4                               # bias, 0.5*sin(b), cls_mag
        + n_pad * c_pad * 4)                                      # output
    cost = pl.CostEstimate(
        flops=2 * n_pad * d_pad * (f_pad + c_pad),
        transcendentals=n_pad * d_pad,
        bytes_accessed=bytes_accessed)

    out = pl.pallas_call(
        _onlinehd_kernel,
        out_shape=jax.ShapeDtypeStruct((n_pad, c_pad), jnp.float32),
        grid_spec=pltpu.PrefetchScalarGridSpec(
            num_scalar_prefetch=0,
            grid=grid,
            in_specs=[
                pl.BlockSpec((batch_tile, f_pad), lambda i, k: (i, 0)),  # x
                pl.BlockSpec((f_pad, d_tile), lambda i, k: (0, k)),      # 2*W_enc^T
                pl.BlockSpec((1, d_tile), lambda i, k: (0, k)),          # bias
                pl.BlockSpec((1, d_tile), lambda i, k: (0, k)),          # 0.5*sin(bias)
                pl.BlockSpec((d_tile, c_pad), lambda i, k: (k, 0)),      # W_cls^T
                pl.BlockSpec((1, c_pad), lambda i, k: (0, 0)),           # ||W_cls||
            ],
            out_specs=pl.BlockSpec((batch_tile, c_pad), lambda i, k: (i, 0)),
            scratch_shapes=[
                pltpu.VMEM((batch_tile, 1), jnp.float32),   # ||enc||^2 accumulator
            ],
        ),
        compiler_params=pltpu.CompilerParams(
            dimension_semantics=("parallel", "arbitrary"),
            vmem_limit_bytes=vmem_limit,
        ),
        cost_estimate=cost,
    )(x_p, w_enc_t, b_p, half_sinb, w_cls_t, cls_mag)

    # Slice off batch / class padding outside the kernel (lane-dense store inside).
    return out[:n, :c]


def onlinehd_reference(x, w_enc, b_enc, w_cls):
    """Pure-JAX reference mirroring torchhd Sinusoid + Centroid (cosine sim)."""
    proj = x @ w_enc.T
    enc = jnp.cos(proj + b_enc) * jnp.sin(proj)
    dot = enc @ w_cls.T
    enc_mag = jnp.sqrt(jnp.sum(enc * enc, axis=-1, keepdims=True))
    cls_mag = jnp.sqrt(jnp.sum(w_cls * w_cls, axis=-1, keepdims=True))
    mag = jnp.maximum(enc_mag * cls_mag.T, EPS)
    return dot / mag


if __name__ == "__main__":
    # Full-f32 matmuls for the XLA reference so the numerical comparison is
    # meaningful against the f32 kernel run.
    jax.config.update("jax_default_matmul_precision", "highest")

    # Small shapes consistent with OnlineHD(n_features, n_dimensions, n_classes).
    n_features = 32
    n_dimensions = 384
    n_classes = 8
    batch = 40

    key = jax.random.PRNGKey(0)
    k_x, k_we, k_be, k_wc = jax.random.split(key, 4)

    # Synthetic parameters matching the module's shapes:
    #   Sinusoid.weight ~ Normal,            shape (n_dimensions, n_features)
    #   Sinusoid.bias   ~ Uniform(0, 2*pi),  shape (1, n_dimensions)
    #   Centroid.weight                       shape (n_classes, n_dimensions)
    #   (zero-init in torchhd; random here so the forward is non-degenerate)
    x = jax.random.normal(k_x, (batch, n_features), dtype=jnp.float32)
    w_enc = jax.random.normal(k_we, (n_dimensions, n_features), dtype=jnp.float32)
    b_enc = jax.random.uniform(k_be, (1, n_dimensions), dtype=jnp.float32,
                               minval=0.0, maxval=2.0 * math.pi)
    w_cls = jax.random.normal(k_wc, (n_classes, n_dimensions), dtype=jnp.float32)

    ref = onlinehd_reference(x, w_enc, b_enc, w_cls)

    # 1) f32, forced small tiles so the (batch, D) grid actually iterates and
    #    exercises batch padding (40 -> 48) plus the D-axis accumulation path.
    out_f32 = onlinehd_forward(x, w_enc, b_enc, w_cls, batch_tile=16, d_tile=128,
                               compute_dtype=jnp.float32,
                               allow_weight_residency=False)
    out_f32 = jax.block_until_ready(out_f32)
    assert out_f32.shape == (batch, n_classes)
    assert jnp.allclose(out_f32, ref, atol=1e-4, rtol=1e-4), "f32 mismatch vs reference"

    # 2) Defaults: bf16 matmul operands, fully-resident weights (single D step),
    #    batch split into >= 2 parallel tiles for v7x megacore.
    out_bf16 = onlinehd_forward(x, w_enc, b_enc, w_cls)
    out_bf16 = jax.block_until_ready(out_bf16)
    assert out_bf16.shape == (batch, n_classes)
    assert jnp.all(jnp.isfinite(out_bf16))
    assert jnp.allclose(out_bf16, ref, atol=3e-2, rtol=3e-2), "bf16 mismatch vs reference"

    # TODO(synk): fit()/add_online training loop and dimension regeneration are
    # not part of forward() and are not implemented as kernels.
    print("KERNEL_OK")
</pallas_src>

<mosaic_0001>
module attributes {stable_mosaic.version = 11 : i64} {
  func.func @_onlinehd_kernel(%arg0: i32, %arg1: i32, %arg2: memref<16x128xf32, #tpu.memory_space<vmem>>, %arg3: memref<128x128xf32, #tpu.memory_space<vmem>>, %arg4: memref<1x128xf32, #tpu.memory_space<vmem>>, %arg5: memref<1x128xf32, #tpu.memory_space<vmem>>, %arg6: memref<128x128xf32, #tpu.memory_space<vmem>>, %arg7: memref<1x128xf32, #tpu.memory_space<vmem>>, %arg8: memref<16x128xf32, #tpu.memory_space<vmem>>, %arg9: memref<16x1xf32, #tpu.memory_space<vmem>>) attributes {dimension_semantics = [#tpu.dimension_semantics<parallel>, #tpu.dimension_semantics<arbitrary>], iteration_bounds = array<i64: 3, 3>, scalar_prefetch = 0 : i64, scratch_operands = 1 : i64, tpu.core_type = #tpu.core_type<tc>, window_params = [{transform_indices = @transform_0, window_bounds = array<i64: 16, 128>}, {transform_indices = @transform_1, window_bounds = array<i64: 128, 128>}, {transform_indices = @transform_2, window_bounds = array<i64: 1, 128>}, {transform_indices = @transform_3, window_bounds = array<i64: 1, 128>}, {transform_indices = @transform_4, window_bounds = array<i64: 128, 128>}, {pipeline_mode = #tpu.pipeline_mode<synchronous>, transform_indices = @transform_5, window_bounds = array<i64: 1, 128>}, {transform_indices = @transform_6, window_bounds = array<i64: 16, 128>}]} {
    %c0_i32 = arith.constant 0 : i32
    %0 = arith.cmpi eq, %arg1, %c0_i32 : i32
    %1 = arith.extui %0 : i1 to i32
    %c0_i32_0 = arith.constant 0 : i32
    %2 = arith.cmpi ne, %1, %c0_i32_0 : i32
    scf.if %2 {
      %cst_22 = arith.constant 0.000000e+00 : f32
      %29 = vector.broadcast %cst_22 : f32 to vector<16x128xf32>
      %c0_23 = arith.constant 0 : index
      %c0_24 = arith.constant 0 : index
      %30 = vector.load %arg8[%c0_23, %c0_24] : memref<16x128xf32, #tpu.memory_space<vmem>>, vector<16x128xf32>
      tpu.vector_store %arg8[%c0_23, %c0_24], %29 {strides = array<i32>} : memref<16x128xf32, #tpu.memory_space<vmem>>, vector<16x128xf32>,
      %cst_25 = arith.constant 0.000000e+00 : f32
      %31 = vector.broadcast %cst_25 : f32 to vector<16x1xf32>
      %c0_26 = arith.constant 0 : index
      %c0_27 = arith.constant 0 : index
      %32 = vector.load %arg9[%c0_26, %c0_27] : memref<16x1xf32, #tpu.memory_space<vmem>>, vector<16x1xf32>
      tpu.vector_store %arg9[%c0_26, %c0_27], %31 {strides = array<i32>} : memref<16x1xf32, #tpu.memory_space<vmem>>, vector<16x1xf32>,
    } else {
    }
    %c0 = arith.constant 0 : index
    %c0_1 = arith.constant 0 : index
    %3 = vector.load %arg2[%c0, %c0_1] : memref<16x128xf32, #tpu.memory_space<vmem>>, vector<16x128xf32>
    %c0_2 = arith.constant 0 : index
    %c0_3 = arith.constant 0 : index
    %4 = vector.load %arg3[%c0_2, %c0_3] : memref<128x128xf32, #tpu.memory_space<vmem>>, vector<128x128xf32>
    %cst = arith.constant dense<0.000000e+00> : vector<16x128xf32>
    %5 = tpu.matmul %3, %4, %cst {dimension_numbers = #tpu.dot_dimension_numbers<[1], [0], [0], [1], [0, 0, 1, 1], [], []>, precision = #tpu.contract_precision<fp32>} : vector<16x128xf32>, vector<128x128xf32>, vector<16x128xf32> -> vector<16x128xf32>
    %c0_4 = arith.constant 0 : index
    %c0_5 = arith.constant 0 : index
    %6 = vector.load %arg4[%c0_4, %c0_5] : memref<1x128xf32, #tpu.memory_space<vmem>>, vector<1x128xf32>
    %7 = vector.broadcast %6 : vector<1x128xf32> to vector<16x128xf32>
    %8 = arith.addf %5, %7 : vector<16x128xf32>
    %9 = math.sin %8 : vector<16x128xf32>
    %cst_6 = arith.constant 5.000000e-01 : f32
    %10 = vector.broadcast %cst_6 : f32 to vector<16x128xf32>
    %11 = arith.mulf %10, %9 : vector<16x128xf32>
    %c0_7 = arith.constant 0 : index
    %c0_8 = arith.constant 0 : index
    %12 = vector.load %arg5[%c0_7, %c0_8] : memref<1x128xf32, #tpu.memory_space<vmem>>, vector<1x128xf32>
    %13 = vector.broadcast %12 : vector<1x128xf32> to vector<16x128xf32>
    %14 = arith.subf %11, %13 : vector<16x128xf32>
    %c0_9 = arith.constant 0 : index
    %c0_10 = arith.constant 0 : index
    %15 = vector.load %arg8[%c0_9, %c0_10] : memref<16x128xf32, #tpu.memory_space<vmem>>, vector<16x128xf32>
    %c0_11 = arith.constant 0 : index
    %c0_12 = arith.constant 0 : index
    %16 = vector.load %arg6[%c0_11, %c0_12] : memref<128x128xf32, #tpu.memory_space<vmem>>, vector<128x128xf32>
    %cst_13 = arith.constant dense<0.000000e+00> : vector<16x128xf32>
    %17 = tpu.matmul %14, %16, %cst_13 {dimension_numbers = #tpu.dot_dimension_numbers<[1], [0], [0], [1], [0, 0, 1, 1], [], []>, precision = #tpu.contract_precision<fp32>} : vector<16x128xf32>, vector<128x128xf32>, vector<16x128xf32> -> vector<16x128xf32>
    %18 = arith.addf %15, %17 : vector<16x128xf32>
    %c0_14 = arith.constant 0 : index
    %c0_15 = arith.constant 0 : index
    %19 = vector.load %arg8[%c0_14, %c0_15] : memref<16x128xf32, #tpu.memory_space<vmem>>, vector<16x128xf32>
    tpu.vector_store %arg8[%c0_14, %c0_15], %18 {strides = array<i32>} : memref<16x128xf32, #tpu.memory_space<vmem>>, vector<16x128xf32>,
    %c0_16 = arith.constant 0 : index
    %c0_17 = arith.constant 0 : index
    %20 = vector.load %arg9[%c0_16, %c0_17] : memref<16x1xf32, #tpu.memory_space<vmem>>, vector<16x1xf32>
    %21 = arith.mulf %14, %14 : vector<16x128xf32>
    %cst_18 = arith.constant dense<0.000000e+00> : vector<16xf32>
    %22 = vector.multi_reduction <add>, %21, %cst_18 [1] : vector<16x128xf32> to vector<16xf32>
    %23 = vector.shape_cast %22 : vector<16xf32> to vector<16x1xf32>
    %24 = arith.addf %20, %23 : vector<16x1xf32>
    %c0_19 = arith.constant 0 : index
    %c0_20 = arith.constant 0 : index
    %25 = vector.load %arg9[%c0_19, %c0_20] : memref<16x1xf32, #tpu.memory_space<vmem>>, vector<16x1xf32>
    tpu.vector_store %arg9[%c0_19, %c0_20], %24 {strides = array<i32>} : memref<16x1xf32, #tpu.memory_space<vmem>>, vector<16x1xf32>,
    %c2_i32 = arith.constant 2 : i32
    %26 = arith.cmpi eq, %arg1, %c2_i32 : i32
    %27 = arith.extui %26 : i1 to i32
    %c0_i32_21 = arith.constant 0 : i32
    %28 = arith.cmpi ne, %27, %c0_i32_21 : i32
    scf.if %28 {
      %c0_22 = arith.constant 0 : index
      %c0_23 = arith.constant 0 : index
      %29 = vector.load %arg9[%c0_22, %c0_23] : memref<16x1xf32, #tpu.memory_space<vmem>>, vector<16x1xf32>
      %30 = math.sqrt %29 : vector<16x1xf32>
      %c0_24 = arith.constant 0 : index
      %c0_25 = arith.constant 0 : index
      %31 = vector.load %arg7[%c0_24, %c0_25] : memref<1x128xf32, #tpu.memory_space<vmem>>, vector<1x128xf32>
      %32 = vector.broadcast %30 : vector<16x1xf32> to vector<16x128xf32>
      %33 = vector.broadcast %31 : vector<1x128xf32> to vector<16x128xf32>
      %34 = arith.mulf %32, %33 : vector<16x128xf32>
      %cst_26 = arith.constant 9.99999993E-9 : f32
      %35 = vector.broadcast %cst_26 : f32 to vector<16x128xf32>
      %36 = arith.maximumf %34, %35 : vector<16x128xf32>
      %c0_27 = arith.constant 0 : index
      %c0_28 = arith.constant 0 : index
      %37 = vector.load %arg8[%c0_27, %c0_28] : memref<16x128xf32, #tpu.memory_space<vmem>>, vector<16x128xf32>
      %38 = arith.divf %37, %36 : vector<16x128xf32>
      %c0_29 = arith.constant 0 : index
      %c0_30 = arith.constant 0 : index
      %39 = vector.load %arg8[%c0_29, %c0_30] : memref<16x128xf32, #tpu.memory_space<vmem>>, vector<16x128xf32>
      tpu.vector_store %arg8[%c0_29, %c0_30], %38 {strides = array<i32>} : memref<16x128xf32, #tpu.memory_space<vmem>>, vector<16x128xf32>,
    } else {
    }
    return
  }
  func.func @transform_0(%arg0: i32, %arg1: i32) -> (i32, i32) {
    %c0_i32 = arith.constant 0 : i32
    %c0_i32_0 = arith.constant 0 : i32
    return %arg0, %c0_i32 : i32, i32
  }
  func.func @transform_1(%arg0: i32, %arg1: i32) -> (i32, i32) {
    %c0_i32 = arith.constant 0 : i32
    %c0_i32_0 = arith.constant 0 : i32
    return %c0_i32, %arg1 : i32, i32
  }
  func.func @transform_2(%arg0: i32, %arg1: i32) -> (i32, i32) {
    %c0_i32 = arith.constant 0 : i32
    %c0_i32_0 = arith.constant 0 : i32
    return %c0_i32, %arg1 : i32, i32
  }
  func.func @transform_3(%arg0: i32, %arg1: i32) -> (i32, i32) {
    %c0_i32 = arith.constant 0 : i32
    %c0_i32_0 = arith.constant 0 : i32
    return %c0_i32, %arg1 : i32, i32
  }
  func.func @transform_4(%arg0: i32, %arg1: i32) -> (i32, i32) {
    %c0_i32 = arith.constant 0 : i32
    %c0_i32_0 = arith.constant 0 : i32
    return %arg1, %c0_i32 : i32, i32
  }
  func.func @transform_5(%arg0: i32, %arg1: i32) -> (i32, i32) {
    %c0_i32 = arith.constant 0 : i32
    %c0_i32_0 = arith.constant 0 : i32
    %c0_i32_1 = arith.constant 0 : i32
    return %c0_i32, %c0_i32_0 : i32, i32
  }
  func.func @transform_6(%arg0: i32, %arg1: i32) -> (i32, i32) {
    %c0_i32 = arith.constant 0 : i32
    %c0_i32_0 = arith.constant 0 : i32
    return %arg0, %c0_i32 : i32, i32
  }
}

</mosaic_0001>

<llo_original>
// kernel: tpu_custom_call.1
$region0: #{tpu_custom_call.1}
  #allocation0 [shape = 'u32[]', space=smem, size = 0x4, offset = 0x4, fixed_abs, tag = 'smem constant byte address 0x4 - core index']
  #allocation1 [shape = 'u32[144,128]{1,0:T(1,128)}', space=vmem, size = 0x12000, scoped, tag = 'internal scratch']
  #allocation2 [shape = 'f32[16,1]{1,0:T(8,128)}', space=vmem, size = 0x2000, scoped, tag = 'scratch operand']
  %s0 = inlined_call_operand.hbm [shape: f32[48,128], index: 0, kind: input, shape index: {}]
  %s1 = inlined_call_operand.hbm [shape: f32[128,384], index: 1, kind: input, shape index: {}]
  %s2 = inlined_call_operand.vmem [shape: f32[1,384], index: 2, kind: input, shape index: {}]
  %s3 = inlined_call_operand.vmem [shape: f32[1,384], index: 3, kind: input, shape index: {}]
  %s4 = inlined_call_operand.hbm [shape: f32[384,128], index: 4, kind: input, shape index: {}]
  %s5 = inlined_call_operand.vmem [shape: f32[1,128], index: 5, kind: input, shape index: {}]
  %s6 = inlined_call_operand.hbm [shape: f32[48,128], index: 6, kind: output, shape index: {}]
  %s7 = sld [smem:[#allocation0]]
  $region77: #{tpu_custom_call.1} parent=0
    _
  %s9 = ssub.s32 1, %s7
  %s10 = scalar_select 0, %s9, %s7
  $region1: #{tpu_custom_call.1} parent=0
    #allocation3 [shape = 'u8[16384]{0}', space=vmem, size = 0x4000, scoped, tag = 'input window, operand 0']
    #allocation4 [shape = 's32[2]{0}', space=sflag, size = 0x8, scoped, tag = 'scoped memory for tpu_custom_call.1']
    #allocation5 [shape = 's32[2]{0}', space=sflag, size = 0x8, scoped, tag = 'scoped memory for tpu_custom_call.1']
    #allocation6 [shape = 'u8[131072]{0}', space=vmem, size = 0x20000, scoped, tag = 'input window, operand 1']
    #allocation7 [shape = 's32[2]{0}', space=sflag, size = 0x8, scoped, tag = 'scoped memory for tpu_custom_call.1']
    #allocation8 [shape = 'u8[131072]{0}', space=vmem, size = 0x20000, scoped, tag = 'input window, operand 4']
    #allocation9 [shape = 'u8[16384]{0}', space=vmem, size = 0x4000, scoped, tag = 'output window, operand 0']
    %11 = vsyncpa [#allocation4], 0
    %s12 = scalar_lea.sflag [#allocation4], 1
    %13 = vsyncpa %s12, 0
    %14 = vsyncpa [#allocation7], 0
    %s15 = scalar_lea.sflag [#allocation7], 1
    %16 = vsyncpa %s15, 0
    %17 = vsyncpa [#allocation5], 0
    %s18 = scalar_lea.sflag [#allocation5], 1
    %19 = vsyncpa %s18, 0
    loop: start=0, step=1, limit=11
    $region2: #{tpu_custom_call.1} parent=1 // loop_pre_header
      _
    $region3: #{tpu_custom_call.1} parent=1 // loop_header
      %s21 = sphi 0, %s25
      %p22 = scmp.ge.s32.totalorder %s21, 11
      %s28 = sphi 0, %s40
      %s29 = sphi 0, %s36
      %s30 = sphi 0, %s28
      %s31 = sphi 0, %s29
      %s32 = sphi 0, %s30
      %s33 = sphi 0, %s31
      %s43 = sphi 0, %s45
      %s46 = sphi 0, %s43
      %s47 = sphi 0, %s46
      %s63 = sphi 0, %s47
      %s69 = sphi 0, %s71
      %s72 = sphi 0, %s69
      %s73 = sphi 0, %s72
      %s89 = sphi 0, %s73
      %s95 = sphi 0, %s97
      %s98 = sphi 0, %s95
      %s99 = sphi 0, %s98
      %s115 = sphi 0, %s99
      %s121 = sphi 0, %s123
      %s124 = sphi 0, %s121
      %s125 = sphi 0, %s124
      %s141 = sphi 0, %s125
      %s147 = sphi 0, %s149
      %s150 = sphi 0, %s147
      %s151 = sphi 0, %s150
      %s167 = sphi 0, %s151
      %s171 = sphi 0, %s171
      %s173 = sphi 0, %s171
      %s174 = sphi 0, %s173
      %s188 = sphi 0, %s174
      %s194 = sphi 0, %s196
      %s197 = sphi 0, %s194
      %s198 = sphi 0, %s197
      %s214 = sphi 0, %s198
    $region4: #{tpu_custom_call.1} parent=1 // loop_header_branch
      %24 = sbr.rel (%p22) target = $region8
    $region5: #{tpu_custom_call.1} parent=1 // loop_body
      %s26 = ssub.s32 %s21, 1
      %s27 = ssub.s32 %s21, 2
      %s34 = sadd.s32 1, %s29
      %p35 = scmp.ge.s32.totalorder %s34, 3
      %s36 = scalar_select %p35, 0, %s34
      %s37 = sadd.s32 1, %s28
      %s38 = scalar_select %p35, %s37, %s28
      %p39 = scmp.ge.s32.totalorder %s38, 3
      %s40 = scalar_select %p39, 0, %s38
      %s41 = ssub.s32 %s28, %s40
      %p42 = scmp.eq.s32.totalorder %s41, 0
      %s44 = sadd.s32 %s43, 1
      %s45 = scalar_select %p42, %s43, %s44
      %p48 = pneg %p42
      %p49 = scmp.eq.s32.totalorder %s21, 8
      %p50 = por %p48, %p49
      %p51 = scmp.ne.s32.totalorder %s43, %s46
      %p52 = scmp.eq.s32.totalorder %s21, 0
      %p53 = por %p51, %p52
      %p54 = scmp.ne.s32.totalorder %s43, %s46
      %p55 = scmp.eq.s32.totalorder %s26, 8
      %p56 = por %p54, %p55
      %p57 = scmp.ne.s32.totalorder %s46, %s47
      %p58 = scmp.eq.s32.totalorder %s26, 0
      %p59 = por %p57, %p58
      %p60 = scmp.ne.s32.totalorder %s46, %s47
      %p61 = scmp.eq.s32.totalorder %s27, 8
      %p62 = por %p60, %p61
      %p64 = scmp.ne.s32.totalorder %s47, %s63
      %p65 = scmp.eq.s32.totalorder %s27, 0
      %p66 = por %p64, %p65
      %s67 = ssub.s32 %s29, %s36
      %p68 = scmp.eq.s32.totalorder %s67, 0
      %s70 = sadd.s32 %s69, 1
      %s71 = scalar_select %p68, %s69, %s70
      %p74 = pneg %p68
      %p75 = scmp.eq.s32.totalorder %s21, 8
      %p76 = por %p74, %p75
      %p77 = scmp.ne.s32.totalorder %s69, %s72
      %p78 = scmp.eq.s32.totalorder %s21, 0
      %p79 = por %p77, %p78
      %p80 = scmp.ne.s32.totalorder %s69, %s72
      %p81 = scmp.eq.s32.totalorder %s26, 8
      %p82 = por %p80, %p81
      %p83 = scmp.ne.s32.totalorder %s72, %s73
      %p84 = scmp.eq.s32.totalorder %s26, 0
      %p85 = por %p83, %p84
      %p86 = scmp.ne.s32.totalorder %s72, %s73
      %p87 = scmp.eq.s32.totalorder %s27, 8
      %p88 = por %p86, %p87
      %p90 = scmp.ne.s32.totalorder %s73, %s89
      %p91 = scmp.eq.s32.totalorder %s27, 0
      %p92 = por %p90, %p91
      %s93 = ssub.s32 %s29, %s36
      %p94 = scmp.eq.s32.totalorder %s93, 0
      %s96 = sadd.s32 %s95, 1
      %s97 = scalar_select %p94, %s95, %s96
      %p100 = pneg %p94
      %p101 = scmp.eq.s32.totalorder %s21, 8
      %p102 = por %p100, %p101
      %p103 = scmp.ne.s32.totalorder %s95, %s98
      %p104 = scmp.eq.s32.totalorder %s21, 0
      %p105 = por %p103, %p104
      %p106 = scmp.ne.s32.totalorder %s95, %s98
      %p107 = scmp.eq.s32.totalorder %s26, 8
      %p108 = por %p106, %p107
      %p109 = scmp.ne.s32.totalorder %s98, %s99
      %p110 = scmp.eq.s32.totalorder %s26, 0
      %p111 = por %p109, %p110
      %p112 = scmp.ne.s32.totalorder %s98, %s99
      %p113 = scmp.eq.s32.totalorder %s27, 8
      %p114 = por %p112, %p113
      %p116 = scmp.ne.s32.totalorder %s99, %s115
      %p117 = scmp.eq.s32.totalorder %s27, 0
      %p118 = por %p116, %p117
      %s119 = ssub.s32 %s29, %s36
      %p120 = scmp.eq.s32.totalorder %s119, 0
      %s122 = sadd.s32 %s121, 1
      %s123 = scalar_select %p120, %s121, %s122
      %p126 = pneg %p120
      %p127 = scmp.eq.s32.totalorder %s21, 8
      %p128 = por %p126, %p127
      %p129 = scmp.ne.s32.totalorder %s121, %s124
      %p130 = scmp.eq.s32.totalorder %s21, 0
      %p131 = por %p129, %p130
      %p132 = scmp.ne.s32.totalorder %s121, %s124
      %p133 = scmp.eq.s32.totalorder %s26, 8
      %p134 = por %p132, %p133
      %p135 = scmp.ne.s32.totalorder %s124, %s125
      %p136 = scmp.eq.s32.totalorder %s26, 0
      %p137 = por %p135, %p136
      %p138 = scmp.ne.s32.totalorder %s124, %s125
      %p139 = scmp.eq.s32.totalorder %s27, 8
      %p140 = por %p138, %p139
      %p142 = scmp.ne.s32.totalorder %s125, %s141
      %p143 = scmp.eq.s32.totalorder %s27, 0
      %p144 = por %p142, %p143
      %s145 = ssub.s32 %s29, %s36
      %p146 = scmp.eq.s32.totalorder %s145, 0
      %s148 = sadd.s32 %s147, 1
      %s149 = scalar_select %p146, %s147, %s148
      %p152 = pneg %p146
      %p153 = scmp.eq.s32.totalorder %s21, 8
      %p154 = por %p152, %p153
      %p155 = scmp.ne.s32.totalorder %s147, %s150
      %p156 = scmp.eq.s32.totalorder %s21, 0
      %p157 = por %p155, %p156
      %p158 = scmp.ne.s32.totalorder %s147, %s150
      %p159 = scmp.eq.s32.totalorder %s26, 8
      %p160 = por %p158, %p159
      %p161 = scmp.ne.s32.totalorder %s150, %s151
      %p162 = scmp.eq.s32.totalorder %s26, 0
      %p163 = por %p161, %p162
      %p164 = scmp.ne.s32.totalorder %s150, %s151
      %p165 = scmp.eq.s32.totalorder %s27, 8
      %p166 = por %p164, %p165
      %p168 = scmp.ne.s32.totalorder %s151, %s167
      %p169 = scmp.eq.s32.totalorder %s27, 0
      %p170 = por %p168, %p169
      %s172 = sadd.s32 %s171, 1
      %p175 = scmp.eq.s32.totalorder %s21, 8
      %p176 = scmp.ne.s32.totalorder %s171, %s173
      %p177 = scmp.eq.s32.totalorder %s21, 0
      %p178 = por %p176, %p177
      %p179 = scmp.ne.s32.totalorder %s171, %s173
      %p180 = scmp.eq.s32.totalorder %s26, 8
      %p181 = por %p179, %p180
      %p182 = scmp.ne.s32.totalorder %s173, %s174
      %p183 = scmp.eq.s32.totalorder %s26, 0
      %p184 = por %p182, %p183
      %p185 = scmp.ne.s32.totalorder %s173, %s174
      %p186 = scmp.eq.s32.totalorder %s27, 8
      %p187 = por %p185, %p186
      %p189 = scmp.ne.s32.totalorder %s174, %s188
      %p190 = scmp.eq.s32.totalorder %s27, 0
      %p191 = por %p189, %p190
      %s192 = ssub.s32 %s28, %s40
      %p193 = scmp.eq.s32.totalorder %s192, 0
      %s195 = sadd.s32 %s194, 1
      %s196 = scalar_select %p193, %s194, %s195
      %p199 = pneg %p193
      %p200 = scmp.eq.s32.totalorder %s21, 8
      %p201 = por %p199, %p200
      %p202 = scmp.ne.s32.totalorder %s194, %s197
      %p203 = scmp.eq.s32.totalorder %s21, 0
      %p204 = por %p202, %p203
      %p205 = scmp.ne.s32.totalorder %s194, %s197
      %p206 = scmp.eq.s32.totalorder %s26, 8
      %p207 = por %p205, %p206
      %p208 = scmp.ne.s32.totalorder %s197, %s198
      %p209 = scmp.eq.s32.totalorder %s26, 0
      %p210 = por %p208, %p209
      %p211 = scmp.ne.s32.totalorder %s197, %s198
      %p212 = scmp.eq.s32.totalorder %s27, 8
      %p213 = por %p211, %p212
      %p215 = scmp.ne.s32.totalorder %s198, %s214
      %p216 = scmp.eq.s32.totalorder %s27, 0
      %p217 = por %p215, %p216
      %p218 = scmp.le.s32.totalorder 1, %s21
      %p219 = scmp.lt.s32.totalorder %s21, 10
      %p220 = pnand %p218, %p219
      %p221 = pneg %p220
      // Predicated region
      $region9: #{tpu_custom_call.1} parent=5 // pred_check
        _
      $region10: #{tpu_custom_call.1} parent=5 // pred_check_branch
        %223 = sbr.rel (%p220) target = $region12
      $region11: #{tpu_custom_call.1} parent=5 // pred_region
        %s224 = ssub.s32 %s21, 1
        // Predicated region
        $region13: #{tpu_custom_call.1} parent=11 // pred_check
          %p225 = pneg %p184
        $region14: #{tpu_custom_call.1} parent=11 // pred_check_branch
          %227 = sbr.rel (%p225) target = $region16
        $region15: #{tpu_custom_call.1} parent=11 // pred_region
          _
        $region16: #{tpu_custom_call.1} parent=11 // pred_fallthru
          _
      $region12: #{tpu_custom_call.1} parent=5 // pred_fallthru
        _
      %p228 = scmp.lt.s32.totalorder %s21, 9
      // Predicated region
      $region17: #{tpu_custom_call.1} parent=5 // pred_check
        %p229 = pneg %p228
      $region18: #{tpu_custom_call.1} parent=5 // pred_check_branch
        %231 = sbr.rel (%p229) target = $region20
      $region19: #{tpu_custom_call.1} parent=5 // pred_region
        // Predicated region
        $region21: #{tpu_custom_call.1} parent=19 // pred_check
          %p232 = pneg %p53
        $region22: #{tpu_custom_call.1} parent=19 // pred_check_branch
          %234 = sbr.rel (%p232) target = $region24
        $region23: #{tpu_custom_call.1} parent=19 // pred_region
          %s235 = sand.u32 %s43, 1
          %s236 = scalar_lea.sflag [#allocation4], %s235
          %s237 = sand.u32 %s43, 1
          %s238 = smul.addr %s237, 16
          %s239 = scalar_lea.vmem [#allocation3], %s238
          %s240 = smul.u32 2, %s28
          %s242 = ssub.s32 256, 256
          %243 = vsyncadd %s236, %s242
          %s244 = smul.addr %s240, 128
          %s245 = scalar_lea.hbm %s0, %s244
          %s246 = sshll.u32 %s239, 4
          %s247 = int_to_ptr.vmem [resolvable:$true] %s246
          %252 = dma.hbm_to_vmem [thread:$0]  %s245, 256, %s247, %s236, 128, 128, 8
        $region24: #{tpu_custom_call.1} parent=19 // pred_fallthru
          _
        // Predicated region
        $region25: #{tpu_custom_call.1} parent=19 // pred_check
          %p253 = pneg %p79
        $region26: #{tpu_custom_call.1} parent=19 // pred_check_branch
          %255 = sbr.rel (%p253) target = $region28
        $region27: #{tpu_custom_call.1} parent=19 // pred_region
          %s256 = sand.u32 %s21, 1
          %s257 = scalar_lea.sflag [#allocation7], %s256
          %s258 = sand.u32 %s69, 1
          %s259 = smul.addr %s258, 128
          %s260 = scalar_lea.vmem [#allocation6], %s259
          %s262 = ssub.s32 2048, 2048
          %263 = vsyncadd %s257, %s262
          %s264 = smul.addr %s29, 128
          %s265 = scalar_lea.hbm %s1, %s264
          %s266 = sshll.u32 %s260, 4
          %s267 = int_to_ptr.vmem [resolvable:$true] %s266
          %272 = dma.hbm_to_vmem [thread:$0]  %s265, 2048, %s267, %s257, 384, 128, 8
        $region28: #{tpu_custom_call.1} parent=19 // pred_fallthru
          _
        // Predicated region
        $region29: #{tpu_custom_call.1} parent=19 // pred_check
          %p273 = pneg %p105
        $region30: #{tpu_custom_call.1} parent=19 // pred_check_branch
          %275 = sbr.rel (%p273) target = $region32
        $region31: #{tpu_custom_call.1} parent=19 // pred_region
          %p276 = scmp.lt.s32.totalorder %s29, 2
          %s277 = scalar_select %p276, %s29, 2
          %s278 = scalar_lea.vmem %s2, %s277
        $region32: #{tpu_custom_call.1} parent=19 // pred_fallthru
          _
        // Predicated region
        $region33: #{tpu_custom_call.1} parent=19 // pred_check
          %p279 = pneg %p131
        $region34: #{tpu_custom_call.1} parent=19 // pred_check_branch
          %281 = sbr.rel (%p279) target = $region36
        $region35: #{tpu_custom_call.1} parent=19 // pred_region
          %p282 = scmp.lt.s32.totalorder %s29, 2
          %s283 = scalar_select %p282, %s29, 2
          %s284 = scalar_lea.vmem %s3, %s283
        $region36: #{tpu_custom_call.1} parent=19 // pred_fallthru
          _
        // Predicated region
        $region37: #{tpu_custom_call.1} parent=19 // pred_check
          %p285 = pneg %p157
        $region38: #{tpu_custom_call.1} parent=19 // pred_check_branch
          %287 = sbr.rel (%p285) target = $region40
        $region39: #{tpu_custom_call.1} parent=19 // pred_region
          %s288 = sand.u32 %s21, 1
          %s289 = scalar_lea.sflag [#allocation7], %s288
          %s290 = sand.u32 %s147, 1
          %s291 = smul.addr %s290, 128
          %s292 = scalar_lea.vmem [#allocation8], %s291
          %s293 = smul.u32 16, %s29
          %s295 = ssub.s32 2048, 2048
          %296 = vsyncadd %s289, %s295
          %s297 = smul.addr %s293, 128
          %s298 = scalar_lea.hbm %s4, %s297
          %s299 = sshll.u32 %s292, 4
          %s300 = int_to_ptr.vmem [resolvable:$true] %s299
          %305 = dma.hbm_to_vmem [thread:$0]  %s298, 2048, %s300, %s289, 128, 128, 8
        $region40: #{tpu_custom_call.1} parent=19 // pred_fallthru
          _
      $region20: #{tpu_custom_call.1} parent=5 // pred_fallthru
        _
      %p306 = scmp.le.s32.totalorder 1, %s21
      %p307 = scmp.lt.s32.totalorder %s21, 10
      %p308 = pnand %p306, %p307
      %p309 = pneg %p308
      // Predicated region
      $region41: #{tpu_custom_call.1} parent=5 // pred_check
        _
      $region42: #{tpu_custom_call.1} parent=5 // pred_check_branch
        %311 = sbr.rel (%p308) target = $region44
      $region43: #{tpu_custom_call.1} parent=5 // pred_region
        %s312 = ssub.s32 %s21, 1
        %s313 = sand.u32 %s46, 1
        %s314 = scalar_lea.sflag [#allocation4], %s313
        %s315 = sand.u32 %s46, 1
        %s316 = smul.addr %s315, 16
        %s317 = scalar_lea.vmem [#allocation3], %s316
        // Predicated region
        $region45: #{tpu_custom_call.1} parent=43 // pred_check
          %p318 = pneg %p59
        $region46: #{tpu_custom_call.1} parent=43 // pred_check_branch
          %320 = sbr.rel (%p318) target = $region48
        $region47: #{tpu_custom_call.1} parent=43 // pred_region
          %321 = dma.done %s314, 256
        $region48: #{tpu_custom_call.1} parent=43 // pred_fallthru
          _
        %s322 = sand.u32 %s26, 1
        %s323 = scalar_lea.sflag [#allocation7], %s322
        %s324 = sand.u32 %s72, 1
        %s325 = smul.addr %s324, 128
        %s326 = scalar_lea.vmem [#allocation6], %s325
        // Predicated region
        $region49: #{tpu_custom_call.1} parent=43 // pred_check
          %p327 = pneg %p85
        $region50: #{tpu_custom_call.1} parent=43 // pred_check_branch
          %329 = sbr.rel (%p327) target = $region52
        $region51: #{tpu_custom_call.1} parent=43 // pred_region
          %330 = dma.done %s323, 2048
        $region52: #{tpu_custom_call.1} parent=43 // pred_fallthru
          _
        %s331 = sand.u32 %s26, 1
        %s332 = scalar_lea.sflag [#allocation7], %s331
        %s333 = sand.u32 %s150, 1
        %s334 = smul.addr %s333, 128
        %s335 = scalar_lea.vmem [#allocation8], %s334
        // Predicated region
        $region53: #{tpu_custom_call.1} parent=43 // pred_check
          %p336 = pneg %p163
        $region54: #{tpu_custom_call.1} parent=43 // pred_check_branch
          %338 = sbr.rel (%p336) target = $region56
        $region55: #{tpu_custom_call.1} parent=43 // pred_region
          %339 = dma.done %s332, 2048
        $region56: #{tpu_custom_call.1} parent=43 // pred_fallthru
          _
        %s340 = sand.u32 %s46, 1
        %s341 = scalar_lea.sflag [#allocation4], %s340
        %s342 = sand.u32 %s46, 1
        %s343 = smul.addr %s342, 16
        %s344 = scalar_lea.vmem [#allocation3], %s343
        %p345 = pneg %p59
        %p346 = pneg %p56
        %s347 = sand.u32 %s26, 1
        %s348 = scalar_lea.sflag [#allocation7], %s347
        %s349 = sand.u32 %s72, 1
        %s350 = smul.addr %s349, 128
        %s351 = scalar_lea.vmem [#allocation6], %s350
        %p352 = pneg %p85
        %p353 = pneg %p82
        %p354 = scmp.lt.s32.totalorder %s31, 2
        %s355 = scalar_select %p354, %s31, 2
        %s356 = scalar_lea.vmem %s2, %s355
        %p357 = pneg %p111
        %p358 = pneg %p108
        %p359 = scmp.lt.s32.totalorder %s31, 2
        %s360 = scalar_select %p359, %s31, 2
        %s361 = scalar_lea.vmem %s3, %s360
        %p362 = pneg %p137
        %p363 = pneg %p134
        %s364 = sand.u32 %s26, 1
        %s365 = scalar_lea.sflag [#allocation7], %s364
        %s366 = sand.u32 %s150, 1
        %s367 = smul.addr %s366, 128
        %s368 = scalar_lea.vmem [#allocation8], %s367
        %p369 = pneg %p163
        %p370 = pneg %p160
        %p371 = pneg %p184
        %p372 = pneg %p181
        %p373 = pneg %p210
        %p374 = pneg %p207
        %s375 = sand.u32 %s197, 1
        %s376 = scalar_lea.sflag [#allocation5], %s375
        %s377 = sand.u32 %s197, 1
        %s378 = smul.addr %s377, 16
        %s379 = scalar_lea.vmem [#allocation9], %s378
        %s380 = smul.u32 2, %s30
        %p381 = scmp.lt.s32.totalorder %s31, 2
        %s382 = scalar_select %p381, %s31, 2
        %s383 = scalar_lea.vmem %s2, %s382
        %p384 = scmp.lt.s32.totalorder %s31, 2
        %s385 = scalar_select %p384, %s31, 2
        %s386 = scalar_lea.vmem %s3, %s385
        %s387 = smul.u32 16, %s31
        %s388 = smul.u32 2, %s30
        %p389 = scmp.eq.s32.totalorder %s31, 0
        // Predicated region
        $region57: #{tpu_custom_call.1} parent=43 // pred_check
          %p390 = pneg %p389
        $region58: #{tpu_custom_call.1} parent=43 // pred_check_branch
          %392 = sbr.rel (%p390) target = $region60
        $region59: #{tpu_custom_call.1} parent=43 // pred_region
          %393 = vst [vmem:[%s379] sm:$0xff] 0.0
          %394 = vst [vmem:[%s379 + $0x8] sm:$0xff] 0.0
          %vm395 = vcmask 7168
          %396 = vst.msk [vmem:[#allocation2] sm:$0xff] %vm395, 0.0
          %397 = vst.msk [vmem:[#allocation2 + $0x8] sm:$0xff] %vm395, 0.0
        $region60: #{tpu_custom_call.1} parent=43 // pred_fallthru
          _
        %v398 = vld [vmem:[%s317] sm:$0xff]
        %v399 = vld [vmem:[%s317 + $0x8] sm:$0xff]
        %v400 = vld [vmem:[%s326] sm:$0xff]
        %v401 = vld [vmem:[%s326 + $0x8] sm:$0xff]
        %v402 = vld [vmem:[%s326 + $0x10] sm:$0xff]
        %v403 = vld [vmem:[%s326 + $0x18] sm:$0xff]
        %v404 = vld [vmem:[%s326 + $0x20] sm:$0xff]
        %v405 = vld [vmem:[%s326 + $0x28] sm:$0xff]
        %v406 = vld [vmem:[%s326 + $0x30] sm:$0xff]
        %v407 = vld [vmem:[%s326 + $0x38] sm:$0xff]
        %v408 = vld [vmem:[%s326 + $0x40] sm:$0xff]
        %v409 = vld [vmem:[%s326 + $0x48] sm:$0xff]
        %v410 = vld [vmem:[%s326 + $0x50] sm:$0xff]
        %v411 = vld [vmem:[%s326 + $0x58] sm:$0xff]
        %v412 = vld [vmem:[%s326 + $0x60] sm:$0xff]
        %v413 = vld [vmem:[%s326 + $0x68] sm:$0xff]
        %v414 = vld [vmem:[%s326 + $0x70] sm:$0xff]
        %v415 = vld [vmem:[%s326 + $0x78] sm:$0xff]
        %v416 = vld [vmem:[%s383] sm:$0x1]
        %v418 = vlaneseq
        %v419 = vshrl.u32 %v418, 7
        %v420 = vsub.s32 0, %v419
        %v421 = vrot.slane %v416, %v420
        %423 = vmatprep.subr.mxu0 0.0
        %v424 = vand.u32 %v400, 4294901760
        %425 = vmatpush1.msra.mxu0 %v424
        %426 = vmatprep.subr.mxu0 0.0
        %v427 = vand.u32 %v401, 4294901760
        %428 = vmatpush1.msra.mxu0 %v427
        %429 = vmatprep.subr.mxu0 0.0
        %v430 = vand.u32 %v402, 4294901760
        %431 = vmatpush1.msra.mxu0 %v430
        %432 = vmatprep.subr.mxu0 0.0
        %v433 = vand.u32 %v403, 4294901760
        %434 = vmatpush1.msra.mxu0 %v433
        %435 = vmatprep.subr.mxu0 0.0
        %v436 = vand.u32 %v404, 4294901760
        %437 = vmatpush1.msra.mxu0 %v436
        %438 = vmatprep.subr.mxu0 0.0
        %v439 = vand.u32 %v405, 4294901760
        %440 = vmatpush1.msra.mxu0 %v439
        %441 = vmatprep.subr.mxu0 0.0
        %v442 = vand.u32 %v406, 4294901760
        %443 = vmatpush1.msra.mxu0 %v442
        %444 = vmatprep.subr.mxu0 0.0
        %v445 = vand.u32 %v407, 4294901760
        %446 = vmatpush1.msra.mxu0 %v445
        %447 = vmatprep.subr.mxu0 0.0
        %v448 = vand.u32 %v408, 4294901760
        %449 = vmatpush1.msra.mxu0 %v448
        %450 = vmatprep.subr.mxu0 0.0
        %v451 = vand.u32 %v409, 4294901760
        %452 = vmatpush1.msra.mxu0 %v451
        %453 = vmatprep.subr.mxu0 0.0
        %v454 = vand.u32 %v410, 4294901760
        %455 = vmatpush1.msra.mxu0 %v454
        %456 = vmatprep.subr.mxu0 0.0
        %v457 = vand.u32 %v411, 4294901760
        %458 = vmatpush1.msra.mxu0 %v457
        %459 = vmatprep.subr.mxu0 0.0
        %v460 = vand.u32 %v412, 4294901760
        %461 = vmatpush1.msra.mxu0 %v460
        %462 = vmatprep.subr.mxu0 0.0
        %v463 = vand.u32 %v413, 4294901760
        %464 = vmatpush1.msra.mxu0 %v463
        %465 = vmatprep.subr.mxu0 0.0
        %v466 = vand.u32 %v414, 4294901760
        %467 = vmatpush1.msra.mxu0 %v466
        %468 = vmatprep.subr.mxu0 0.0
        %v469 = vand.u32 %v415, 4294901760
        %470 = vmatpush1.msra.mxu0 %v469
        %471 = vmatprep.subr.mxu0 0.0
        %472 = vmatpush1.msra.mxu0 0.0
        %473 = vmatprep.subr.mxu0 0.0
        %474 = vmatpush1.msra.mxu0 0.0
        %475 = vmatprep.subr.mxu0 0.0
        %476 = vmatpush1.msra.mxu0 0.0
        %477 = vmatprep.subr.mxu0 0.0
        %478 = vmatpush1.msra.mxu0 0.0
        %479 = vmatprep.subr.mxu0 0.0
        %480 = vmatpush1.msra.mxu0 0.0
        %481 = vmatprep.subr.mxu0 0.0
        %482 = vmatpush1.msra.mxu0 0.0
        %483 = vmatprep.subr.mxu0 0.0
        %484 = vmatpush1.msra.mxu0 0.0
        %485 = vmatprep.subr.mxu0 0.0
        %486 = vmatpush1.msra.mxu0 0.0
        %487 = vmatprep.subr.mxu0 0.0
        %488 = vmatpush1.msra.mxu0 0.0
        %489 = vmatprep.subr.mxu0 0.0
        %490 = vmatpush1.msra.mxu0 0.0
        %491 = vmatprep.subr.mxu0 0.0
        %492 = vmatpush1.msra.mxu0 0.0
        %493 = vmatprep.subr.mxu0 0.0
        %494 = vmatpush1.msra.mxu0 0.0
        %495 = vmatprep.subr.mxu0 0.0
        %496 = vmatpush1.msra.mxu0 0.0
        %497 = vmatprep.subr.mxu0 0.0
        %498 = vmatpush1.msra.mxu0 0.0
        %499 = vmatprep.subr.mxu0 0.0
        %500 = vmatpush1.msra.mxu0 0.0
        %501 = vmatprep.subr.mxu0 0.0
        %502 = vmatpush1.msra.mxu0 0.0
        %503 = vmatprep.mubr.f32.mxu0 0.0
        %v504 = vand.u32 %v398, 4294901760
        %v505 = vsub.f32 %v398, %v504
        %v506 = vand.u32 %v505, 4294901760
        %v507 = vsub.f32 %v505, %v506
        %v508 = vand.u32 %v507, 4294901760
        %509 = vmatmul.mubr.f32.gmra.mrb[0].mxu0 %v508
        %v510 = vpop.f32.mrb[0].mxu0
        %v511 = vadd.f32 %v421, %v510
        %v512 = vpop.f32.mrb[0].mxu0
        %513 = vmatprep.mubr.f32.mxu0 0.0
        %v514 = vand.u32 %v399, 4294901760
        %v515 = vsub.f32 %v399, %v514
        %v516 = vand.u32 %v515, 4294901760
        %v517 = vsub.f32 %v515, %v516
        %v518 = vand.u32 %v517, 4294901760
        %519 = vmatmul.mubr.f32.gmra.mrb[0].mxu0 %v518
        %v520 = vpop.f32.mrb[0].mxu0
        %v521 = vadd.f32 %v421, %v520
        %v522 = vpop.f32.mrb[0].mxu0
        %523 = vdwg.mxu0
        %524 = vmatprep.subr.mxu0 0.0
        %v525 = vand.u32 %v400, 4294901760
        %v526 = vsub.f32 %v400, %v525
        %v527 = vand.u32 %v526, 4294901760
        %v528 = vsub.f32 %v526, %v527
        %v529 = vand.u32 %v528, 4294901760
        %530 = vmatpush1.msra.mxu0 %v529
        %531 = vmatprep.subr.mxu0 0.0
        %v532 = vand.u32 %v401, 4294901760
        %v533 = vsub.f32 %v401, %v532
        %v534 = vand.u32 %v533, 4294901760
        %v535 = vsub.f32 %v533, %v534
        %v536 = vand.u32 %v535, 4294901760
        %537 = vmatpush1.msra.mxu0 %v536
        %538 = vmatprep.subr.mxu0 0.0
        %v539 = vand.u32 %v402, 4294901760
        %v540 = vsub.f32 %v402, %v539
        %v541 = vand.u32 %v540, 4294901760
        %v542 = vsub.f32 %v540, %v541
        %v543 = vand.u32 %v542, 4294901760
        %544 = vmatpush1.msra.mxu0 %v543
        %545 = vmatprep.subr.mxu0 0.0
        %v546 = vand.u32 %v403, 4294901760
        %v547 = vsub.f32 %v403, %v546
        %v548 = vand.u32 %v547, 4294901760
        %v549 = vsub.f32 %v547, %v548
        %v550 = vand.u32 %v549, 4294901760
        %551 = vmatpush1.msra.mxu0 %v550
        %552 = vmatprep.subr.mxu0 0.0
        %v553 = vand.u32 %v404, 4294901760
        %v554 = vsub.f32 %v404, %v553
        %v555 = vand.u32 %v554, 4294901760
        %v556 = vsub.f32 %v554, %v555
        %v557 = vand.u32 %v556, 4294901760
        %558 = vmatpush1.msra.mxu0 %v557
        %559 = vmatprep.subr.mxu0 0.0
        %v560 = vand.u32 %v405, 4294901760
        %v561 = vsub.f32 %v405, %v560
        %v562 = vand.u32 %v561, 4294901760
        %v563 = vsub.f32 %v561, %v562
        %v564 = vand.u32 %v563, 4294901760
        %565 = vmatpush1.msra.mxu0 %v564
        %566 = vmatprep.subr.mxu0 0.0
        %v567 = vand.u32 %v406, 4294901760
        %v568 = vsub.f32 %v406, %v567
        %v569 = vand.u32 %v568, 4294901760
        %v570 = vsub.f32 %v568, %v569
        %v571 = vand.u32 %v570, 4294901760
        %572 = vmatpush1.msra.mxu0 %v571
        %573 = vmatprep.subr.mxu0 0.0
        %v574 = vand.u32 %v407, 4294901760
        %v575 = vsub.f32 %v407, %v574
        %v576 = vand.u32 %v575, 4294901760
        %v577 = vsub.f32 %v575, %v576
        %v578 = vand.u32 %v577, 4294901760
        %579 = vmatpush1.msra.mxu0 %v578
        %580 = vmatprep.subr.mxu0 0.0
        %v581 = vand.u32 %v408, 4294901760
        %v582 = vsub.f32 %v408, %v581
        %v583 = vand.u32 %v582, 4294901760
        %v584 = vsub.f32 %v582, %v583
        %v585 = vand.u32 %v584, 4294901760
        %586 = vmatpush1.msra.mxu0 %v585
        %587 = vmatprep.subr.mxu0 0.0
        %v588 = vand.u32 %v409, 4294901760
        %v589 = vsub.f32 %v409, %v588
        %v590 = vand.u32 %v589, 4294901760
        %v591 = vsub.f32 %v589, %v590
        %v592 = vand.u32 %v591, 4294901760
        %593 = vmatpush1.msra.mxu0 %v592
        %594 = vmatprep.subr.mxu0 0.0
        %v595 = vand.u32 %v410, 4294901760
        %v596 = vsub.f32 %v410, %v595
        %v597 = vand.u32 %v596, 4294901760
        %v598 = vsub.f32 %v596, %v597
        %v599 = vand.u32 %v598, 4294901760
        %600 = vmatpush1.msra.mxu0 %v599
        %601 = vmatprep.subr.mxu0 0.0
        %v602 = vand.u32 %v411, 4294901760
        %v603 = vsub.f32 %v411, %v602
        %v604 = vand.u32 %v603, 4294901760
        %v605 = vsub.f32 %v603, %v604
        %v606 = vand.u32 %v605, 4294901760
        %607 = vmatpush1.msra.mxu0 %v606
        %608 = vmatprep.subr.mxu0 0.0
        %v609 = vand.u32 %v412, 4294901760
        %v610 = vsub.f32 %v412, %v609
        %v611 = vand.u32 %v610, 4294901760
        %v612 = vsub.f32 %v610, %v611
        %v613 = vand.u32 %v612, 4294901760
        %614 = vmatpush1.msra.mxu0 %v613
        %615 = vmatprep.subr.mxu0 0.0
        %v616 = vand.u32 %v413, 4294901760
        %v617 = vsub.f32 %v413, %v616
        %v618 = vand.u32 %v617, 4294901760
        %v619 = vsub.f32 %v617, %v618
        %v620 = vand.u32 %v619, 4294901760
        %621 = vmatpush1.msra.mxu0 %v620
        %622 = vmatprep.subr.mxu0 0.0
        %v623 = vand.u32 %v414, 4294901760
        %v624 = vsub.f32 %v414, %v623
        %v625 = vand.u32 %v624, 4294901760
        %v626 = vsub.f32 %v624, %v625
        %v627 = vand.u32 %v626, 4294901760
        %628 = vmatpush1.msra.mxu0 %v627
        %629 = vmatprep.subr.mxu0 0.0
        %v630 = vand.u32 %v415, 4294901760
        %v631 = vsub.f32 %v415, %v630
        %v632 = vand.u32 %v631, 4294901760
        %v633 = vsub.f32 %v631, %v632
        %v634 = vand.u32 %v633, 4294901760
        %635 = vmatpush1.msra.mxu0 %v634
        %636 = vmatprep.subr.mxu0 0.0
        %637 = vmatpush1.msra.mxu0 0.0
        %638 = vmatprep.subr.mxu0 0.0
        %639 = vmatpush1.msra.mxu0 0.0
        %640 = vmatprep.subr.mxu0 0.0
        %641 = vmatpush1.msra.mxu0 0.0
        %642 = vmatprep.subr.mxu0 0.0
        %643 = vmatpush1.msra.mxu0 0.0
        %644 = vmatprep.subr.mxu0 0.0
        %645 = vmatpush1.msra.mxu0 0.0
        %646 = vmatprep.subr.mxu0 0.0
        %647 = vmatpush1.msra.mxu0 0.0
        %648 = vmatprep.subr.mxu0 0.0
        %649 = vmatpush1.msra.mxu0 0.0
        %650 = vmatprep.subr.mxu0 0.0
        %651 = vmatpush1.msra.mxu0 0.0
        %652 = vmatprep.subr.mxu0 0.0
        %653 = vmatpush1.msra.mxu0 0.0
        %654 = vmatprep.subr.mxu0 0.0
        %655 = vmatpush1.msra.mxu0 0.0
        %656 = vmatprep.subr.mxu0 0.0
        %657 = vmatpush1.msra.mxu0 0.0
        %658 = vmatprep.subr.mxu0 0.0
        %659 = vmatpush1.msra.mxu0 0.0
        %660 = vmatprep.subr.mxu0 0.0
        %661 = vmatpush1.msra.mxu0 0.0
        %662 = vmatprep.subr.mxu0 0.0
        %663 = vmatpush1.msra.mxu0 0.0
        %664 = vmatprep.subr.mxu0 0.0
        %665 = vmatpush1.msra.mxu0 0.0
        %666 = vmatprep.subr.mxu0 0.0
        %667 = vmatpush1.msra.mxu0 0.0
        %668 = vmatprep.mubr.f32.mxu0 0.0
        %v669 = vand.u32 %v398, 4294901760
        %670 = vmatmul.mubr.f32.gmra.mrb[0].mxu0 %v669
        %v671 = vpop.f32.mrb[0].mxu0
        %v672 = vadd.f32 %v511, %v671
        %v673 = vpop.f32.mrb[0].mxu0
        %674 = vmatprep.mubr.f32.mxu0 0.0
        %v675 = vand.u32 %v399, 4294901760
        %676 = vmatmul.mubr.f32.gmra.mrb[0].mxu0 %v675
        %v677 = vpop.f32.mrb[0].mxu0
        %v678 = vadd.f32 %v521, %v677
        %v679 = vpop.f32.mrb[0].mxu0
        %680 = vdwg.mxu0
        %681 = vmatprep.subr.mxu0 0.0
        %v682 = vand.u32 %v400, 4294901760
        %v683 = vsub.f32 %v400, %v682
        %684 = vmatpush1.msra.mxu0 %v683
        %685 = vmatprep.subr.mxu0 0.0
        %v686 = vand.u32 %v401, 4294901760
        %v687 = vsub.f32 %v401, %v686
        %688 = vmatpush1.msra.mxu0 %v687
        %689 = vmatprep.subr.mxu0 0.0
        %v690 = vand.u32 %v402, 4294901760
        %v691 = vsub.f32 %v402, %v690
        %692 = vmatpush1.msra.mxu0 %v691
        %693 = vmatprep.subr.mxu0 0.0
        %v694 = vand.u32 %v403, 4294901760
        %v695 = vsub.f32 %v403, %v694
        %696 = vmatpush1.msra.mxu0 %v695
        %697 = vmatprep.subr.mxu0 0.0
        %v698 = vand.u32 %v404, 4294901760
        %v699 = vsub.f32 %v404, %v698
        %700 = vmatpush1.msra.mxu0 %v699
        %701 = vmatprep.subr.mxu0 0.0
        %v702 = vand.u32 %v405, 4294901760
        %v703 = vsub.f32 %v405, %v702
        %704 = vmatpush1.msra.mxu0 %v703
        %705 = vmatprep.subr.mxu0 0.0
        %v706 = vand.u32 %v406, 4294901760
        %v707 = vsub.f32 %v406, %v706
        %708 = vmatpush1.msra.mxu0 %v707
        %709 = vmatprep.subr.mxu0 0.0
        %v710 = vand.u32 %v407, 4294901760
        %v711 = vsub.f32 %v407, %v710
        %712 = vmatpush1.msra.mxu0 %v711
        %713 = vmatprep.subr.mxu0 0.0
        %v714 = vand.u32 %v408, 4294901760
        %v715 = vsub.f32 %v408, %v714
        %716 = vmatpush1.msra.mxu0 %v715
        %717 = vmatprep.subr.mxu0 0.0
        %v718 = vand.u32 %v409, 4294901760
        %v719 = vsub.f32 %v409, %v718
        %720 = vmatpush1.msra.mxu0 %v719
        %721 = vmatprep.subr.mxu0 0.0
        %v722 = vand.u32 %v410, 4294901760
        %v723 = vsub.f32 %v410, %v722
        %724 = vmatpush1.msra.mxu0 %v723
        %725 = vmatprep.subr.mxu0 0.0
        %v726 = vand.u32 %v411, 4294901760
        %v727 = vsub.f32 %v411, %v726
        %728 = vmatpush1.msra.mxu0 %v727
        %729 = vmatprep.subr.mxu0 0.0
        %v730 = vand.u32 %v412, 4294901760
        %v731 = vsub.f32 %v412, %v730
        %732 = vmatpush1.msra.mxu0 %v731
        %733 = vmatprep.subr.mxu0 0.0
        %v734 = vand.u32 %v413, 4294901760
        %v735 = vsub.f32 %v413, %v734
        %736 = vmatpush1.msra.mxu0 %v735
        %737 = vmatprep.subr.mxu0 0.0
        %v738 = vand.u32 %v414, 4294901760
        %v739 = vsub.f32 %v414, %v738
        %740 = vmatpush1.msra.mxu0 %v739
        %741 = vmatprep.subr.mxu0 0.0
        %v742 = vand.u32 %v415, 4294901760
        %v743 = vsub.f32 %v415, %v742
        %744 = vmatpush1.msra.mxu0 %v743
        %745 = vmatprep.subr.mxu0 0.0
        %746 = vmatpush1.msra.mxu0 0.0
        %747 = vmatprep.subr.mxu0 0.0
        %748 = vmatpush1.msra.mxu0 0.0
        %749 = vmatprep.subr.mxu0 0.0
        %750 = vmatpush1.msra.mxu0 0.0
        %751 = vmatprep.subr.mxu0 0.0
        %752 = vmatpush1.msra.mxu0 0.0
        %753 = vmatprep.subr.mxu0 0.0
        %754 = vmatpush1.msra.mxu0 0.0
        %755 = vmatprep.subr.mxu0 0.0
        %756 = vmatpush1.msra.mxu0 0.0
        %757 = vmatprep.subr.mxu0 0.0
        %758 = vmatpush1.msra.mxu0 0.0
        %759 = vmatprep.subr.mxu0 0.0
        %760 = vmatpush1.msra.mxu0 0.0
        %761 = vmatprep.subr.mxu0 0.0
        %762 = vmatpush1.msra.mxu0 0.0
        %763 = vmatprep.subr.mxu0 0.0
        %764 = vmatpush1.msra.mxu0 0.0
        %765 = vmatprep.subr.mxu0 0.0
        %766 = vmatpush1.msra.mxu0 0.0
        %767 = vmatprep.subr.mxu0 0.0
        %768 = vmatpush1.msra.mxu0 0.0
        %769 = vmatprep.subr.mxu0 0.0
        %770 = vmatpush1.msra.mxu0 0.0
        %771 = vmatprep.subr.mxu0 0.0
        %772 = vmatpush1.msra.mxu0 0.0
        %773 = vmatprep.subr.mxu0 0.0
        %774 = vmatpush1.msra.mxu0 0.0
        %775 = vmatprep.subr.mxu0 0.0
        %776 = vmatpush1.msra.mxu0 0.0
        %777 = vmatprep.mubr.f32.mxu0 0.0
        %v778 = vand.u32 %v398, 4294901760
        %v779 = vsub.f32 %v398, %v778
        %780 = vmatmul.mubr.f32.gmra.mrb[0].mxu0 %v779
        %v781 = vpop.f32.mrb[0].mxu0
        %v782 = vadd.f32 %v672, %v781
        %v783 = vpop.f32.mrb[0].mxu0
        %784 = vmatprep.mubr.f32.mxu0 0.0
        %v785 = vand.u32 %v399, 4294901760
        %v786 = vsub.f32 %v399, %v785
        %787 = vmatmul.mubr.f32.gmra.mrb[0].mxu0 %v786
        %v788 = vpop.f32.mrb[0].mxu0
        %v789 = vadd.f32 %v678, %v788
        %v790 = vpop.f32.mrb[0].mxu0
        %791 = vdwg.mxu0
        %792 = vmatprep.subr.mxu0 0.0
        %v793 = vand.u32 %v400, 4294901760
        %794 = vmatpush1.msra.mxu0 %v793
        %795 = vmatprep.subr.mxu0 0.0
        %v796 = vand.u32 %v401, 4294901760
        %797 = vmatpush1.msra.mxu0 %v796
        %798 = vmatprep.subr.mxu0 0.0
        %v799 = vand.u32 %v402, 4294901760
        %800 = vmatpush1.msra.mxu0 %v799
        %801 = vmatprep.subr.mxu0 0.0
        %v802 = vand.u32 %v403, 4294901760
        %803 = vmatpush1.msra.mxu0 %v802
        %804 = vmatprep.subr.mxu0 0.0
        %v805 = vand.u32 %v404, 4294901760
        %806 = vmatpush1.msra.mxu0 %v805
        %807 = vmatprep.subr.mxu0 0.0
        %v808 = vand.u32 %v405, 4294901760
        %809 = vmatpush1.msra.mxu0 %v808
        %810 = vmatprep.subr.mxu0 0.0
        %v811 = vand.u32 %v406, 4294901760
        %812 = vmatpush1.msra.mxu0 %v811
        %813 = vmatprep.subr.mxu0 0.0
        %v814 = vand.u32 %v407, 4294901760
        %815 = vmatpush1.msra.mxu0 %v814
        %816 = vmatprep.subr.mxu0 0.0
        %v817 = vand.u32 %v408, 4294901760
        %818 = vmatpush1.msra.mxu0 %v817
        %819 = vmatprep.subr.mxu0 0.0
        %v820 = vand.u32 %v409, 4294901760
        %821 = vmatpush1.msra.mxu0 %v820
        %822 = vmatprep.subr.mxu0 0.0
        %v823 = vand.u32 %v410, 4294901760
        %824 = vmatpush1.msra.mxu0 %v823
        %825 = vmatprep.subr.mxu0 0.0
        %v826 = vand.u32 %v411, 4294901760
        %827 = vmatpush1.msra.mxu0 %v826
        %828 = vmatprep.subr.mxu0 0.0
        %v829 = vand.u32 %v412, 4294901760
        %830 = vmatpush1.msra.mxu0 %v829
        %831 = vmatprep.subr.mxu0 0.0
        %v832 = vand.u32 %v413, 4294901760
        %833 = vmatpush1.msra.mxu0 %v832
        %834 = vmatprep.subr.mxu0 0.0
        %v835 = vand.u32 %v414, 4294901760
        %836 = vmatpush1.msra.mxu0 %v835
        %837 = vmatprep.subr.mxu0 0.0
        %v838 = vand.u32 %v415, 4294901760
        %839 = vmatpush1.msra.mxu0 %v838
        %840 = vmatprep.subr.mxu0 0.0
        %841 = vmatpush1.msra.mxu0 0.0
        %842 = vmatprep.subr.mxu0 0.0
        %843 = vmatpush1.msra.mxu0 0.0
        %844 = vmatprep.subr.mxu0 0.0
        %845 = vmatpush1.msra.mxu0 0.0
        %846 = vmatprep.subr.mxu0 0.0
        %847 = vmatpush1.msra.mxu0 0.0
        %848 = vmatprep.subr.mxu0 0.0
        %849 = vmatpush1.msra.mxu0 0.0
        %850 = vmatprep.subr.mxu0 0.0
        %851 = vmatpush1.msra.mxu0 0.0
        %852 = vmatprep.subr.mxu0 0.0
        %853 = vmatpush1.msra.mxu0 0.0
        %854 = vmatprep.subr.mxu0 0.0
        %855 = vmatpush1.msra.mxu0 0.0
        %856 = vmatprep.subr.mxu0 0.0
        %857 = vmatpush1.msra.mxu0 0.0
        %858 = vmatprep.subr.mxu0 0.0
        %859 = vmatpush1.msra.mxu0 0.0
        %860 = vmatprep.subr.mxu0 0.0
        %861 = vmatpush1.msra.mxu0 0.0
        %862 = vmatprep.subr.mxu0 0.0
        %863 = vmatpush1.msra.mxu0 0.0
        %864 = vmatprep.subr.mxu0 0.0
        %865 = vmatpush1.msra.mxu0 0.0
        %866 = vmatprep.subr.mxu0 0.0
        %867 = vmatpush1.msra.mxu0 0.0
        %868 = vmatprep.subr.mxu0 0.0
        %869 = vmatpush1.msra.mxu0 0.0
        %870 = vmatprep.subr.mxu0 0.0
        %871 = vmatpush1.msra.mxu0 0.0
        %872 = vmatprep.mubr.f32.mxu0 0.0
        %v873 = vand.u32 %v398, 4294901760
        %v874 = vsub.f32 %v398, %v873
        %v875 = vand.u32 %v874, 4294901760
        %876 = vmatmul.mubr.f32.gmra.mrb[0].mxu0 %v875
        %v877 = vpop.f32.mrb[0].mxu0
        %v878 = vadd.f32 %v782, %v877
        %v879 = vpop.f32.mrb[0].mxu0
        %880 = vmatprep.mubr.f32.mxu0 0.0
        %v881 = vand.u32 %v399, 4294901760
        %v882 = vsub.f32 %v399, %v881
        %v883 = vand.u32 %v882, 4294901760
        %884 = vmatmul.mubr.f32.gmra.mrb[0].mxu0 %v883
        %v885 = vpop.f32.mrb[0].mxu0
        %v886 = vadd.f32 %v789, %v885
        %v887 = vpop.f32.mrb[0].mxu0
        %888 = vdwg.mxu0
        %889 = vmatprep.subr.mxu0 0.0
        %v890 = vand.u32 %v400, 4294901760
        %v891 = vsub.f32 %v400, %v890
        %v892 = vand.u32 %v891, 4294901760
        %893 = vmatpush1.msra.mxu0 %v892
        %894 = vmatprep.subr.mxu0 0.0
        %v895 = vand.u32 %v401, 4294901760
        %v896 = vsub.f32 %v401, %v895
        %v897 = vand.u32 %v896, 4294901760
        %898 = vmatpush1.msra.mxu0 %v897
        %899 = vmatprep.subr.mxu0 0.0
        %v900 = vand.u32 %v402, 4294901760
        %v901 = vsub.f32 %v402, %v900
        %v902 = vand.u32 %v901, 4294901760
        %903 = vmatpush1.msra.mxu0 %v902
        %904 = vmatprep.subr.mxu0 0.0
        %v905 = vand.u32 %v403, 4294901760
        %v906 = vsub.f32 %v403, %v905
        %v907 = vand.u32 %v906, 4294901760
        %908 = vmatpush1.msra.mxu0 %v907
        %909 = vmatprep.subr.mxu0 0.0
        %v910 = vand.u32 %v404, 4294901760
        %v911 = vsub.f32 %v404, %v910
        %v912 = vand.u32 %v911, 4294901760
        %913 = vmatpush1.msra.mxu0 %v912
        %914 = vmatprep.subr.mxu0 0.0
        %v915 = vand.u32 %v405, 4294901760
        %v916 = vsub.f32 %v405, %v915
        %v917 = vand.u32 %v916, 4294901760
        %918 = vmatpush1.msra.mxu0 %v917
        %919 = vmatprep.subr.mxu0 0.0
        %v920 = vand.u32 %v406, 4294901760
        %v921 = vsub.f32 %v406, %v920
        %v922 = vand.u32 %v921, 4294901760
        %923 = vmatpush1.msra.mxu0 %v922
        %924 = vmatprep.subr.mxu0 0.0
        %v925 = vand.u32 %v407, 4294901760
        %v926 = vsub.f32 %v407, %v925
        %v927 = vand.u32 %v926, 4294901760
        %928 = vmatpush1.msra.mxu0 %v927
        %929 = vmatprep.subr.mxu0 0.0
        %v930 = vand.u32 %v408, 4294901760
        %v931 = vsub.f32 %v408, %v930
        %v932 = vand.u32 %v931, 4294901760
        %933 = vmatpush1.msra.mxu0 %v932
        %934 = vmatprep.subr.mxu0 0.0
        %v935 = vand.u32 %v409, 4294901760
        %v936 = vsub.f32 %v409, %v935
        %v937 = vand.u32 %v936, 4294901760
        %938 = vmatpush1.msra.mxu0 %v937
        %939 = vmatprep.subr.mxu0 0.0
        %v940 = vand.u32 %v410, 4294901760
        %v941 = vsub.f32 %v410, %v940
        %v942 = vand.u32 %v941, 4294901760
        %943 = vmatpush1.msra.mxu0 %v942
        %944 = vmatprep.subr.mxu0 0.0
        %v945 = vand.u32 %v411, 4294901760
        %v946 = vsub.f32 %v411, %v945
        %v947 = vand.u32 %v946, 4294901760
        %948 = vmatpush1.msra.mxu0 %v947
        %949 = vmatprep.subr.mxu0 0.0
        %v950 = vand.u32 %v412, 4294901760
        %v951 = vsub.f32 %v412, %v950
        %v952 = vand.u32 %v951, 4294901760
        %953 = vmatpush1.msra.mxu0 %v952
        %954 = vmatprep.subr.mxu0 0.0
        %v955 = vand.u32 %v413, 4294901760
        %v956 = vsub.f32 %v413, %v955
        %v957 = vand.u32 %v956, 4294901760
        %958 = vmatpush1.msra.mxu0 %v957
        %959 = vmatprep.subr.mxu0 0.0
        %v960 = vand.u32 %v414, 4294901760
        %v961 = vsub.f32 %v414, %v960
        %v962 = vand.u32 %v961, 4294901760
        %963 = vmatpush1.msra.mxu0 %v962
        %964 = vmatprep.subr.mxu0 0.0
        %v965 = vand.u32 %v415, 4294901760
        %v966 = vsub.f32 %v415, %v965
        %v967 = vand.u32 %v966, 4294901760
        %968 = vmatpush1.msra.mxu0 %v967
        %969 = vmatprep.subr.mxu0 0.0
        %970 = vmatpush1.msra.mxu0 0.0
        %971 = vmatprep.subr.mxu0 0.0
        %972 = vmatpush1.msra.mxu0 0.0
        %973 = vmatprep.subr.mxu0 0.0
        %974 = vmatpush1.msra.mxu0 0.0
        %975 = vmatprep.subr.mxu0 0.0
        %976 = vmatpush1.msra.mxu0 0.0
        %977 = vmatprep.subr.mxu0 0.0
        %978 = vmatpush1.msra.mxu0 0.0
        %979 = vmatprep.subr.mxu0 0.0
        %980 = vmatpush1.msra.mxu0 0.0
        %981 = vmatprep.subr.mxu0 0.0
        %982 = vmatpush1.msra.mxu0 0.0
        %983 = vmatprep.subr.mxu0 0.0
        %984 = vmatpush1.msra.mxu0 0.0
        %985 = vmatprep.subr.mxu0 0.0
        %986 = vmatpush1.msra.mxu0 0.0
        %987 = vmatprep.subr.mxu0 0.0
        %988 = vmatpush1.msra.mxu0 0.0
        %989 = vmatprep.subr.mxu0 0.0
        %990 = vmatpush1.msra.mxu0 0.0
        %991 = vmatprep.subr.mxu0 0.0
        %992 = vmatpush1.msra.mxu0 0.0
        %993 = vmatprep.subr.mxu0 0.0
        %994 = vmatpush1.msra.mxu0 0.0
        %995 = vmatprep.subr.mxu0 0.0
        %996 = vmatpush1.msra.mxu0 0.0
        %997 = vmatprep.subr.mxu0 0.0
        %998 = vmatpush1.msra.mxu0 0.0
        %999 = vmatprep.subr.mxu0 0.0
        %1000 = vmatpush1.msra.mxu0 0.0
        %1001 = vmatprep.mubr.f32.mxu0 0.0
        %v1002 = vand.u32 %v398, 4294901760
        %1003 = vmatmul.mubr.f32.gmra.mrb[0].mxu0 %v1002
        %v1004 = vpop.f32.mrb[0].mxu0
        %v1005 = vadd.f32 %v878, %v1004
        %v1006 = vpop.f32.mrb[0].mxu0
        %1007 = vmatprep.mubr.f32.mxu0 0.0
        %v1008 = vand.u32 %v399, 4294901760
        %1009 = vmatmul.mubr.f32.gmra.mrb[0].mxu0 %v1008
        %v1010 = vpop.f32.mrb[0].mxu0
        %v1011 = vadd.f32 %v886, %v1010
        %v1012 = vpop.f32.mrb[0].mxu0
        %1013 = vdwg.mxu0
        %1014 = vmatprep.subr.mxu0 0.0
        %v1015 = vand.u32 %v400, 4294901760
        %1016 = vmatpush1.msra.mxu0 %v1015
        %1017 = vmatprep.subr.mxu0 0.0
        %v1018 = vand.u32 %v401, 4294901760
        %1019 = vmatpush1.msra.mxu0 %v1018
        %1020 = vmatprep.subr.mxu0 0.0
        %v1021 = vand.u32 %v402, 4294901760
        %1022 = vmatpush1.msra.mxu0 %v1021
        %1023 = vmatprep.subr.mxu0 0.0
        %v1024 = vand.u32 %v403, 4294901760
        %1025 = vmatpush1.msra.mxu0 %v1024
        %1026 = vmatprep.subr.mxu0 0.0
        %v1027 = vand.u32 %v404, 4294901760
        %1028 = vmatpush1.msra.mxu0 %v1027
        %1029 = vmatprep.subr.mxu0 0.0
        %v1030 = vand.u32 %v405, 4294901760
        %1031 = vmatpush1.msra.mxu0 %v1030
        %1032 = vmatprep.subr.mxu0 0.0
        %v1033 = vand.u32 %v406, 4294901760
        %1034 = vmatpush1.msra.mxu0 %v1033
        %1035 = vmatprep.subr.mxu0 0.0
        %v1036 = vand.u32 %v407, 4294901760
        %1037 = vmatpush1.msra.mxu0 %v1036
        %1038 = vmatprep.subr.mxu0 0.0
        %v1039 = vand.u32 %v408, 4294901760
        %1040 = vmatpush1.msra.mxu0 %v1039
        %1041 = vmatprep.subr.mxu0 0.0
        %v1042 = vand.u32 %v409, 4294901760
        %1043 = vmatpush1.msra.mxu0 %v1042
        %1044 = vmatprep.subr.mxu0 0.0
        %v1045 = vand.u32 %v410, 4294901760
        %1046 = vmatpush1.msra.mxu0 %v1045
        %1047 = vmatprep.subr.mxu0 0.0
        %v1048 = vand.u32 %v411, 4294901760
        %1049 = vmatpush1.msra.mxu0 %v1048
        %1050 = vmatprep.subr.mxu0 0.0
        %v1051 = vand.u32 %v412, 4294901760
        %1052 = vmatpush1.msra.mxu0 %v1051
        %1053 = vmatprep.subr.mxu0 0.0
        %v1054 = vand.u32 %v413, 4294901760
        %1055 = vmatpush1.msra.mxu0 %v1054
        %1056 = vmatprep.subr.mxu0 0.0
        %v1057 = vand.u32 %v414, 4294901760
        %1058 = vmatpush1.msra.mxu0 %v1057
        %1059 = vmatprep.subr.mxu0 0.0
        %v1060 = vand.u32 %v415, 4294901760
        %1061 = vmatpush1.msra.mxu0 %v1060
        %1062 = vmatprep.subr.mxu0 0.0
        %1063 = vmatpush1.msra.mxu0 0.0
        %1064 = vmatprep.subr.mxu0 0.0
        %1065 = vmatpush1.msra.mxu0 0.0
        %1066 = vmatprep.subr.mxu0 0.0
        %1067 = vmatpush1.msra.mxu0 0.0
        %1068 = vmatprep.subr.mxu0 0.0
        %1069 = vmatpush1.msra.mxu0 0.0
        %1070 = vmatprep.subr.mxu0 0.0
        %1071 = vmatpush1.msra.mxu0 0.0
        %1072 = vmatprep.subr.mxu0 0.0
        %1073 = vmatpush1.msra.mxu0 0.0
        %1074 = vmatprep.subr.mxu0 0.0
        %1075 = vmatpush1.msra.mxu0 0.0
        %1076 = vmatprep.subr.mxu0 0.0
        %1077 = vmatpush1.msra.mxu0 0.0
        %1078 = vmatprep.subr.mxu0 0.0
        %1079 = vmatpush1.msra.mxu0 0.0
        %1080 = vmatprep.subr.mxu0 0.0
        %1081 = vmatpush1.msra.mxu0 0.0
        %1082 = vmatprep.subr.mxu0 0.0
        %1083 = vmatpush1.msra.mxu0 0.0
        %1084 = vmatprep.subr.mxu0 0.0
        %1085 = vmatpush1.msra.mxu0 0.0
        %1086 = vmatprep.subr.mxu0 0.0
        %1087 = vmatpush1.msra.mxu0 0.0
        %1088 = vmatprep.subr.mxu0 0.0
        %1089 = vmatpush1.msra.mxu0 0.0
        %1090 = vmatprep.subr.mxu0 0.0
        %1091 = vmatpush1.msra.mxu0 0.0
        %1092 = vmatprep.subr.mxu0 0.0
        %1093 = vmatpush1.msra.mxu0 0.0
        %1094 = vmatprep.mubr.f32.mxu0 0.0
        %v1095 = vand.u32 %v398, 4294901760
        %1096 = vmatmul.mubr.f32.gmra.mrb[0].mxu0 %v1095
        %v1097 = vpop.f32.mrb[0].mxu0
        %v1098 = vadd.f32 %v1005, %v1097
        %v1099 = vpop.f32.mrb[0].mxu0
        %1100 = vmatprep.mubr.f32.mxu0 0.0
        %v1101 = vand.u32 %v399, 4294901760
        %1102 = vmatmul.mubr.f32.gmra.mrb[0].mxu0 %v1101
        %v1103 = vpop.f32.mrb[0].mxu0
        %v1104 = vadd.f32 %v1011, %v1103
        %v1105 = vpop.f32.mrb[0].mxu0
        %1106 = vdwg.mxu0
        %v1107 = vand.u32 2147483647, %v1098
        %vm1108 = vcmp.le.f32.partialorder %v1107, 0.7853982
        %vm1109 = vcmp.lt.s32.totalorder %v1098, 0
        %v1110 = vand.u32 %v1098, 2139095040
        %v1111 = vshrl.u32 %v1110, 23
        %v1112 = vsub.s32 %v1111, 127
        %v1113 = vand.u32 2147483647, %v1098
        %v1114 = vand.u32 %v1113, 8388607
        %v1115 = vor.u32 %v1114, 8388608
        %v1116 = vsub.s32 0, %v1115
        %v1117 = vadd.s32 %v1112, 1
        %vm1118 = vcmp.gt.s32.totalorder %v1117, 0
        %v1119 = vsel %vm1118, %v1117, 0
        %v1120 = vshrl.u32 %v1119, 5
        %v1121 = vand.u32 %v1119, 31
        %v1122 = vsub.s32 32, %v1121
        %v1123 = vshrl.u32 683565275, %v1122
        %v1124 = vshll.u32 683565275, %v1121
        %v1125 = vshrl.u32 2475754826, %v1122
        %v1126 = vor.u32 %v1124, %v1125
        %v1127 = vshll.u32 2475754826, %v1121
        %v1128 = vshrl.u32 2131351028, %v1122
        %v1129 = vor.u32 %v1127, %v1128
        %v1130 = vshll.u32 2131351028, %v1121
        %v1131 = vshrl.u32 2102212464, %v1122
        %v1132 = vor.u32 %v1130, %v1131
        %v1133 = vshll.u32 2102212464, %v1121
        %v1134 = vshrl.u32 920167782, %v1122
        %v1135 = vor.u32 %v1133, %v1134
        %v1136 = vshll.u32 920167782, %v1121
        %v1137 = vshrl.u32 1326507024, %v1122
        %v1138 = vor.u32 %v1136, %v1137
        %vm1139 = vcmp.lt.s32.totalorder %v1120, 1
        %vm1140 = vcmp.lt.s32.totalorder %v1120, 2
        %vm1141 = vcmp.lt.s32.totalorder %v1120, 3
        %vm1142 = vcmp.lt.s32.totalorder %v1120, 4
        %v1143 = vsel %vm1139, %v1123, %v1126
        %v1144 = vsel %vm1142, %v1132, 2102212464
        %v1145 = vsel %vm1141, %v1129, %v1144
        %v1146 = vsel %vm1140, %v1143, %v1145
        %v1147 = vsel %vm1139, %v1126, %v1129
        %v1148 = vsel %vm1142, %v1135, 920167782
        %v1149 = vsel %vm1141, %v1132, %v1148
        %v1150 = vsel %vm1140, %v1147, %v1149
        %v1151 = vsel %vm1139, %v1129, %v1132
        %v1152 = vsel %vm1142, %v1138, 1326507024
        %v1153 = vsel %vm1141, %v1135, %v1152
        %v1154 = vsel %vm1140, %v1151, %v1153
        %v1155 = vshll.u32 %v1115, 8
        %v1156 = vmul.u32.u64.compose %v1155, %v1154
        %v1157 = vextract.low.u32 %v1156
        %v1158 = vextract.high.u32 %v1156
        %v1159 = vmul.u32.u64.compose %v1155, %v1150
        %v1160 = vextract.low.u32 %v1159
        %v1161 = vextract.high.u32 %v1159
        %v1162 = vmul.u32 %v1155, %v1146
        %v1163 = vadd.s32 %v1158, %v1160
        %vm1164 = vc.u32 %v1158, %v1160
        %v1165 = vadd.s32 %v1161, 1
        %v1166 = vsel %vm1164, %v1165, %v1161
        %v1167 = vadd.s32 %v1162, %v1166
        %v1168 = vadd.s32 %v1167, 536870912
        %v1169 = vshrl.u32 %v1168, 30
        %v1170 = vshll.u32 %v1169, 30
        %v1171 = vsub.s32 %v1167, %v1170
        %vm1172 = vcmp.lt.s32.totalorder %v1171, 0
        %v1173 = vsub.s32 0, %v1171
        %v1174 = vsel %vm1172, %v1173, %v1171
        %v1175 = vclz %v1174
        %v1176 = vsub.s32 %v1175, 2
        %vm1177 = vcmp.gt.s32.totalorder 0, %v1176
        %v1178 = vsel %vm1177, 0, %v1176
        %v1179 = vsub.s32 32, %v1178
        %v1180 = vshll.u32 %v1171, %v1178
        %v1181 = vshrl.u32 %v1163, %v1179
        %v1182 = vor.u32 %v1180, %v1181
        %v1183 = vsub.s32 4294967266, %v1178
        %v1184 = vadd.s32 %v1183, 127
        %v1185 = vshll.u32 %v1184, 23
        %v1186 = vor.u32 4788187, %v1185
        %v1187 = vand.u32 2147483647, %v1186
        %v1189 = vcvt.s32.f32 %v1182
        %v1190 = vmul.f32 %v1189, %v1187
        %v1191 = vxor.u32 %v1190, 2147483648
        %v1192 = vsel %vm1109, %v1191, %v1190
        %v1193 = vsub.s32 4, %v1169
        %v1194 = vsel %vm1109, %v1193, %v1169
        %v1195 = vsel %vm1108, %v1098, %v1192
        %v1196 = vsel %vm1108, 0, %v1194
        %v1197 = vcosq.f32.pop %v1195
        %v1198 = vsinq.f32.pop %v1195
        %vm1199 = vweird.f32 %v1098
        %v1200 = vadd.s32 %v1196, 3
        %v1201 = vand.u32 %v1200, 3
        %vm1202 = vcmp.lt.s32.totalorder %v1201, 2
        %vm1203 = vcmp.eq.s32.totalorder %v1201, 0
        %v1204 = vxor.u32 %v1198, 2147483648
        %v1205 = vsel %vm1203, %v1197, %v1204
        %vm1206 = vcmp.eq.s32.totalorder %v1201, 2
        %v1207 = vxor.u32 %v1197, 2147483648
        %v1208 = vsel %vm1206, %v1207, %v1198
        %v1209 = vsel %vm1202, %v1205, %v1208
        %v1210 = vsel %vm1199, nan, %v1209
        %v1211 = vand.u32 2147483647, %v1104
        %vm1212 = vcmp.le.f32.partialorder %v1211, 0.7853982
        %vm1213 = vcmp.lt.s32.totalorder %v1104, 0
        %v1214 = vand.u32 %v1104, 2139095040
        %v1215 = vshrl.u32 %v1214, 23
        %v1216 = vsub.s32 %v1215, 127
        %v1217 = vand.u32 2147483647, %v1104
        %v1218 = vand.u32 %v1217, 8388607
        %v1219 = vor.u32 %v1218, 8388608
        %v1220 = vsub.s32 0, %v1219
        %v1221 = vadd.s32 %v1216, 1
        %vm1222 = vcmp.gt.s32.totalorder %v1221, 0
        %v1223 = vsel %vm1222, %v1221, 0
        %v1224 = vshrl.u32 %v1223, 5
        %v1225 = vand.u32 %v1223, 31
        %v1226 = vsub.s32 32, %v1225
        %v1227 = vshrl.u32 683565275, %v1226
        %v1228 = vshll.u32 683565275, %v1225
        %v1229 = vshrl.u32 2475754826, %v1226
        %v1230 = vor.u32 %v1228, %v1229
        %v1231 = vshll.u32 2475754826, %v1225
        %v1232 = vshrl.u32 2131351028, %v1226
        %v1233 = vor.u32 %v1231, %v1232
        %v1234 = vshll.u32 2131351028, %v1225
        %v1235 = vshrl.u32 2102212464, %v1226
        %v1236 = vor.u32 %v1234, %v1235
        %v1237 = vshll.u32 2102212464, %v1225
        %v1238 = vshrl.u32 920167782, %v1226
        %v1239 = vor.u32 %v1237, %v1238
        %v1240 = vshll.u32 920167782, %v1225
        %v1241 = vshrl.u32 1326507024, %v1226
        %v1242 = vor.u32 %v1240, %v1241
        %vm1243 = vcmp.lt.s32.totalorder %v1224, 1
        %vm1244 = vcmp.lt.s32.totalorder %v1224, 2
        %vm1245 = vcmp.lt.s32.totalorder %v1224, 3
        %vm1246 = vcmp.lt.s32.totalorder %v1224, 4
        %v1247 = vsel %vm1243, %v1227, %v1230
        %v1248 = vsel %vm1246, %v1236, 2102212464
        %v1249 = vsel %vm1245, %v1233, %v1248
        %v1250 = vsel %vm1244, %v1247, %v1249
        %v1251 = vsel %vm1243, %v1230, %v1233
        %v1252 = vsel %vm1246, %v1239, 920167782
        %v1253 = vsel %vm1245, %v1236, %v1252
        %v1254 = vsel %vm1244, %v1251, %v1253
        %v1255 = vsel %vm1243, %v1233, %v1236
        %v1256 = vsel %vm1246, %v1242, 1326507024
        %v1257 = vsel %vm1245, %v1239, %v1256
        %v1258 = vsel %vm1244, %v1255, %v1257
        %v1259 = vshll.u32 %v1219, 8
        %v1260 = vmul.u32.u64.compose %v1259, %v1258
        %v1261 = vextract.low.u32 %v1260
        %v1262 = vextract.high.u32 %v1260
        %v1263 = vmul.u32.u64.compose %v1259, %v1254
        %v1264 = vextract.low.u32 %v1263
        %v1265 = vextract.high.u32 %v1263
        %v1266 = vmul.u32 %v1259, %v1250
        %v1267 = vadd.s32 %v1262, %v1264
        %vm1268 = vc.u32 %v1262, %v1264
        %v1269 = vadd.s32 %v1265, 1
        %v1270 = vsel %vm1268, %v1269, %v1265
        %v1271 = vadd.s32 %v1266, %v1270
        %v1272 = vadd.s32 %v1271, 536870912
        %v1273 = vshrl.u32 %v1272, 30
        %v1274 = vshll.u32 %v1273, 30
        %v1275 = vsub.s32 %v1271, %v1274
        %vm1276 = vcmp.lt.s32.totalorder %v1275, 0
        %v1277 = vsub.s32 0, %v1275
        %v1278 = vsel %vm1276, %v1277, %v1275
        %v1279 = vclz %v1278
        %v1280 = vsub.s32 %v1279, 2
        %vm1281 = vcmp.gt.s32.totalorder 0, %v1280
        %v1282 = vsel %vm1281, 0, %v1280
        %v1283 = vsub.s32 32, %v1282
        %v1284 = vshll.u32 %v1275, %v1282
        %v1285 = vshrl.u32 %v1267, %v1283
        %v1286 = vor.u32 %v1284, %v1285
        %v1287 = vsub.s32 4294967266, %v1282
        %v1288 = vadd.s32 %v1287, 127
        %v1289 = vshll.u32 %v1288, 23
        %v1290 = vor.u32 4788187, %v1289
        %v1291 = vand.u32 2147483647, %v1290
        %v1293 = vcvt.s32.f32 %v1286
        %v1294 = vmul.f32 %v1293, %v1291
        %v1295 = vxor.u32 %v1294, 2147483648
        %v1296 = vsel %vm1213, %v1295, %v1294
        %v1297 = vsub.s32 4, %v1273
        %v1298 = vsel %vm1213, %v1297, %v1273
        %v1299 = vsel %vm1212, %v1104, %v1296
        %v1300 = vsel %vm1212, 0, %v1298
        %v1301 = vcosq.f32.pop %v1299
        %v1302 = vsinq.f32.pop %v1299
        %vm1303 = vweird.f32 %v1104
        %v1304 = vadd.s32 %v1300, 3
        %v1305 = vand.u32 %v1304, 3
        %vm1306 = vcmp.lt.s32.totalorder %v1305, 2
        %vm1307 = vcmp.eq.s32.totalorder %v1305, 0
        %v1308 = vxor.u32 %v1302, 2147483648
        %v1309 = vsel %vm1307, %v1301, %v1308
        %vm1310 = vcmp.eq.s32.totalorder %v1305, 2
        %v1311 = vxor.u32 %v1301, 2147483648
        %v1312 = vsel %vm1310, %v1311, %v1302
        %v1313 = vsel %vm1306, %v1309, %v1312
        %v1314 = vsel %vm1303, nan, %v1313
        %v1315 = vmul.f32 %v1210, 0.5
        %v1316 = vmul.f32 %v1314, 0.5
        %v1317 = vld [vmem:[%s386] sm:$0x1]
        %v1319 = vlaneseq
        %v1320 = vshrl.u32 %v1319, 7
        %v1321 = vsub.s32 0, %v1320
        %v1322 = vrot.slane %v1317, %v1321
        %v1324 = vsub.f32 %v1315, %v1322
        %v1325 = vsub.f32 %v1316, %v1322
        %v1326 = vld [vmem:[%s379] sm:$0xff]
        %v1327 = vld [vmem:[%s379 + $0x8] sm:$0xff]
        %v1328 = vld [vmem:[%s335] sm:$0xff]
        %v1329 = vld [vmem:[%s335 + $0x8] sm:$0xff]
        %v1330 = vld [vmem:[%s335 + $0x10] sm:$0xff]
        %v1331 = vld [vmem:[%s335 + $0x18] sm:$0xff]
        %v1332 = vld [vmem:[%s335 + $0x20] sm:$0xff]
        %v1333 = vld [vmem:[%s335 + $0x28] sm:$0xff]
        %v1334 = vld [vmem:[%s335 + $0x30] sm:$0xff]
        %v1335 = vld [vmem:[%s335 + $0x38] sm:$0xff]
        %v1336 = vld [vmem:[%s335 + $0x40] sm:$0xff]
        %v1337 = vld [vmem:[%s335 + $0x48] sm:$0xff]
        %v1338 = vld [vmem:[%s335 + $0x50] sm:$0xff]
        %v1339 = vld [vmem:[%s335 + $0x58] sm:$0xff]
        %v1340 = vld [vmem:[%s335 + $0x60] sm:$0xff]
        %v1341 = vld [vmem:[%s335 + $0x68] sm:$0xff]
        %v1342 = vld [vmem:[%s335 + $0x70] sm:$0xff]
        %v1343 = vld [vmem:[%s335 + $0x78] sm:$0xff]
        %1344 = vmatprep.subr.mxu0 0.0
        %v1345 = vand.u32 %v1328, 4294901760
        %1346 = vmatpush1.msra.mxu0 %v1345
        %1347 = vmatprep.subr.mxu0 0.0
        %v1348 = vand.u32 %v1329, 4294901760
        %1349 = vmatpush1.msra.mxu0 %v1348
        %1350 = vmatprep.subr.mxu0 0.0
        %v1351 = vand.u32 %v1330, 4294901760
        %1352 = vmatpush1.msra.mxu0 %v1351
        %1353 = vmatprep.subr.mxu0 0.0
        %v1354 = vand.u32 %v1331, 4294901760
        %1355 = vmatpush1.msra.mxu0 %v1354
        %1356 = vmatprep.subr.mxu0 0.0
        %v1357 = vand.u32 %v1332, 4294901760
        %1358 = vmatpush1.msra.mxu0 %v1357
        %1359 = vmatprep.subr.mxu0 0.0
        %v1360 = vand.u32 %v1333, 4294901760
        %1361 = vmatpush1.msra.mxu0 %v1360
        %1362 = vmatprep.subr.mxu0 0.0
        %v1363 = vand.u32 %v1334, 4294901760
        %1364 = vmatpush1.msra.mxu0 %v1363
        %1365 = vmatprep.subr.mxu0 0.0
        %v1366 = vand.u32 %v1335, 4294901760
        %1367 = vmatpush1.msra.mxu0 %v1366
        %1368 = vmatprep.subr.mxu0 0.0
        %v1369 = vand.u32 %v1336, 4294901760
        %1370 = vmatpush1.msra.mxu0 %v1369
        %1371 = vmatprep.subr.mxu0 0.0
        %v1372 = vand.u32 %v1337, 4294901760
        %1373 = vmatpush1.msra.mxu0 %v1372
        %1374 = vmatprep.subr.mxu0 0.0
        %v1375 = vand.u32 %v1338, 4294901760
        %1376 = vmatpush1.msra.mxu0 %v1375
        %1377 = vmatprep.subr.mxu0 0.0
        %v1378 = vand.u32 %v1339, 4294901760
        %1379 = vmatpush1.msra.mxu0 %v1378
        %1380 = vmatprep.subr.mxu0 0.0
        %v1381 = vand.u32 %v1340, 4294901760
        %1382 = vmatpush1.msra.mxu0 %v1381
        %1383 = vmatprep.subr.mxu0 0.0
        %v1384 = vand.u32 %v1341, 4294901760
        %1385 = vmatpush1.msra.mxu0 %v1384
        %1386 = vmatprep.subr.mxu0 0.0
        %v1387 = vand.u32 %v1342, 4294901760
        %1388 = vmatpush1.msra.mxu0 %v1387
        %1389 = vmatprep.subr.mxu0 0.0
        %v1390 = vand.u32 %v1343, 4294901760
        %1391 = vmatpush1.msra.mxu0 %v1390
        %1392 = vmatprep.subr.mxu0 0.0
        %1393 = vmatpush1.msra.mxu0 0.0
        %1394 = vmatprep.subr.mxu0 0.0
        %1395 = vmatpush1.msra.mxu0 0.0
        %1396 = vmatprep.subr.mxu0 0.0
        %1397 = vmatpush1.msra.mxu0 0.0
        %1398 = vmatprep.subr.mxu0 0.0
        %1399 = vmatpush1.msra.mxu0 0.0
        %1400 = vmatprep.subr.mxu0 0.0
        %1401 = vmatpush1.msra.mxu0 0.0
        %1402 = vmatprep.subr.mxu0 0.0
        %1403 = vmatpush1.msra.mxu0 0.0
        %1404 = vmatprep.subr.mxu0 0.0
        %1405 = vmatpush1.msra.mxu0 0.0
        %1406 = vmatprep.subr.mxu0 0.0
        %1407 = vmatpush1.msra.mxu0 0.0
        %1408 = vmatprep.subr.mxu0 0.0
        %1409 = vmatpush1.msra.mxu0 0.0
        %1410 = vmatprep.subr.mxu0 0.0
        %1411 = vmatpush1.msra.mxu0 0.0
        %1412 = vmatprep.subr.mxu0 0.0
        %1413 = vmatpush1.msra.mxu0 0.0
        %1414 = vmatprep.subr.mxu0 0.0
        %1415 = vmatpush1.msra.mxu0 0.0
        %1416 = vmatprep.subr.mxu0 0.0
        %1417 = vmatpush1.msra.mxu0 0.0
        %1418 = vmatprep.subr.mxu0 0.0
        %1419 = vmatpush1.msra.mxu0 0.0
        %1420 = vmatprep.subr.mxu0 0.0
        %1421 = vmatpush1.msra.mxu0 0.0
        %1422 = vmatprep.subr.mxu0 0.0
        %1423 = vmatpush1.msra.mxu0 0.0
        %1424 = vmatprep.mubr.f32.mxu0 0.0
        %v1425 = vand.u32 %v1324, 4294901760
        %v1426 = vsub.f32 %v1324, %v1425
        %v1427 = vand.u32 %v1426, 4294901760
        %v1428 = vsub.f32 %v1426, %v1427
        %v1429 = vand.u32 %v1428, 4294901760
        %1430 = vmatmul.mubr.f32.gmra.mrb[0].mxu0 %v1429
        %v1431 = vpop.f32.mrb[0].mxu0
        %v1432 = vadd.f32 0.0, %v1431
        %v1433 = vpop.f32.mrb[0].mxu0
        %1434 = vmatprep.mubr.f32.mxu0 0.0
        %v1435 = vand.u32 %v1325, 4294901760
        %v1436 = vsub.f32 %v1325, %v1435
        %v1437 = vand.u32 %v1436, 4294901760
        %v1438 = vsub.f32 %v1436, %v1437
        %v1439 = vand.u32 %v1438, 4294901760
        %1440 = vmatmul.mubr.f32.gmra.mrb[0].mxu0 %v1439
        %v1441 = vpop.f32.mrb[0].mxu0
        %v1442 = vadd.f32 0.0, %v1441
        %v1443 = vpop.f32.mrb[0].mxu0
        %1444 = vdwg.mxu0
        %1445 = vmatprep.subr.mxu0 0.0
        %v1446 = vand.u32 %v1328, 4294901760
        %v1447 = vsub.f32 %v1328, %v1446
        %v1448 = vand.u32 %v1447, 4294901760
        %v1449 = vsub.f32 %v1447, %v1448
        %v1450 = vand.u32 %v1449, 4294901760
        %1451 = vmatpush1.msra.mxu0 %v1450
        %1452 = vmatprep.subr.mxu0 0.0
        %v1453 = vand.u32 %v1329, 4294901760
        %v1454 = vsub.f32 %v1329, %v1453
        %v1455 = vand.u32 %v1454, 4294901760
        %v1456 = vsub.f32 %v1454, %v1455
        %v1457 = vand.u32 %v1456, 4294901760
        %1458 = vmatpush1.msra.mxu0 %v1457
        %1459 = vmatprep.subr.mxu0 0.0
        %v1460 = vand.u32 %v1330, 4294901760
        %v1461 = vsub.f32 %v1330, %v1460
        %v1462 = vand.u32 %v1461, 4294901760
        %v1463 = vsub.f32 %v1461, %v1462
        %v1464 = vand.u32 %v1463, 4294901760
        %1465 = vmatpush1.msra.mxu0 %v1464
        %1466 = vmatprep.subr.mxu0 0.0
        %v1467 = vand.u32 %v1331, 4294901760
        %v1468 = vsub.f32 %v1331, %v1467
        %v1469 = vand.u32 %v1468, 4294901760
        %v1470 = vsub.f32 %v1468, %v1469
        %v1471 = vand.u32 %v1470, 4294901760
        %1472 = vmatpush1.msra.mxu0 %v1471
        %1473 = vmatprep.subr.mxu0 0.0
        %v1474 = vand.u32 %v1332, 4294901760
        %v1475 = vsub.f32 %v1332, %v1474
        %v1476 = vand.u32 %v1475, 4294901760
        %v1477 = vsub.f32 %v1475, %v1476
        %v1478 = vand.u32 %v1477, 4294901760
        %1479 = vmatpush1.msra.mxu0 %v1478
        %1480 = vmatprep.subr.mxu0 0.0
        %v1481 = vand.u32 %v1333, 4294901760
        %v1482 = vsub.f32 %v1333, %v1481
        %v1483 = vand.u32 %v1482, 4294901760
        %v1484 = vsub.f32 %v1482, %v1483
        %v1485 = vand.u32 %v1484, 4294901760
        %1486 = vmatpush1.msra.mxu0 %v1485
        %1487 = vmatprep.subr.mxu0 0.0
        %v1488 = vand.u32 %v1334, 4294901760
        %v1489 = vsub.f32 %v1334, %v1488
        %v1490 = vand.u32 %v1489, 4294901760
        %v1491 = vsub.f32 %v1489, %v1490
        %v1492 = vand.u32 %v1491, 4294901760
        %1493 = vmatpush1.msra.mxu0 %v1492
        %1494 = vmatprep.subr.mxu0 0.0
        %v1495 = vand.u32 %v1335, 4294901760
        %v1496 = vsub.f32 %v1335, %v1495
        %v1497 = vand.u32 %v1496, 4294901760
        %v1498 = vsub.f32 %v1496, %v1497
        %v1499 = vand.u32 %v1498, 4294901760
        %1500 = vmatpush1.msra.mxu0 %v1499
        %1501 = vmatprep.subr.mxu0 0.0
        %v1502 = vand.u32 %v1336, 4294901760
        %v1503 = vsub.f32 %v1336, %v1502
        %v1504 = vand.u32 %v1503, 4294901760
        %v1505 = vsub.f32 %v1503, %v1504
        %v1506 = vand.u32 %v1505, 4294901760
        %1507 = vmatpush1.msra.mxu0 %v1506
        %1508 = vmatprep.subr.mxu0 0.0
        %v1509 = vand.u32 %v1337, 4294901760
        %v1510 = vsub.f32 %v1337, %v1509
        %v1511 = vand.u32 %v1510, 4294901760
        %v1512 = vsub.f32 %v1510, %v1511
        %v1513 = vand.u32 %v1512, 4294901760
        %1514 = vmatpush1.msra.mxu0 %v1513
        %1515 = vmatprep.subr.mxu0 0.0
        %v1516 = vand.u32 %v1338, 4294901760
        %v1517 = vsub.f32 %v1338, %v1516
        %v1518 = vand.u32 %v1517, 4294901760
        %v1519 = vsub.f32 %v1517, %v1518
        %v1520 = vand.u32 %v1519, 4294901760
        %1521 = vmatpush1.msra.mxu0 %v1520
        %1522 = vmatprep.subr.mxu0 0.0
        %v1523 = vand.u32 %v1339, 4294901760
        %v1524 = vsub.f32 %v1339, %v1523
        %v1525 = vand.u32 %v1524, 4294901760
        %v1526 = vsub.f32 %v1524, %v1525
        %v1527 = vand.u32 %v1526, 4294901760
        %1528 = vmatpush1.msra.mxu0 %v1527
        %1529 = vmatprep.subr.mxu0 0.0
        %v1530 = vand.u32 %v1340, 4294901760
        %v1531 = vsub.f32 %v1340, %v1530
        %v1532 = vand.u32 %v1531, 4294901760
        %v1533 = vsub.f32 %v1531, %v1532
        %v1534 = vand.u32 %v1533, 4294901760
        %1535 = vmatpush1.msra.mxu0 %v1534
        %1536 = vmatprep.subr.mxu0 0.0
        %v1537 = vand.u32 %v1341, 4294901760
        %v1538 = vsub.f32 %v1341, %v1537
        %v1539 = vand.u32 %v1538, 4294901760
        %v1540 = vsub.f32 %v1538, %v1539
        %v1541 = vand.u32 %v1540, 4294901760
        %1542 = vmatpush1.msra.mxu0 %v1541
        %1543 = vmatprep.subr.mxu0 0.0
        %v1544 = vand.u32 %v1342, 4294901760
        %v1545 = vsub.f32 %v1342, %v1544
        %v1546 = vand.u32 %v1545, 4294901760
        %v1547 = vsub.f32 %v1545, %v1546
        %v1548 = vand.u32 %v1547, 4294901760
        %1549 = vmatpush1.msra.mxu0 %v1548
        %1550 = vmatprep.subr.mxu0 0.0
        %v1551 = vand.u32 %v1343, 4294901760
        %v1552 = vsub.f32 %v1343, %v1551
        %v1553 = vand.u32 %v1552, 4294901760
        %v1554 = vsub.f32 %v1552, %v1553
        %v1555 = vand.u32 %v1554, 4294901760
        %1556 = vmatpush1.msra.mxu0 %v1555
        %1557 = vmatprep.subr.mxu0 0.0
        %1558 = vmatpush1.msra.mxu0 0.0
        %1559 = vmatprep.subr.mxu0 0.0
        %1560 = vmatpush1.msra.mxu0 0.0
        %1561 = vmatprep.subr.mxu0 0.0
        %1562 = vmatpush1.msra.mxu0 0.0
        %1563 = vmatprep.subr.mxu0 0.0
        %1564 = vmatpush1.msra.mxu0 0.0
        %1565 = vmatprep.subr.mxu0 0.0
        %1566 = vmatpush1.msra.mxu0 0.0
        %1567 = vmatprep.subr.mxu0 0.0
        %1568 = vmatpush1.msra.mxu0 0.0
        %1569 = vmatprep.subr.mxu0 0.0
        %1570 = vmatpush1.msra.mxu0 0.0
        %1571 = vmatprep.subr.mxu0 0.0
        %1572 = vmatpush1.msra.mxu0 0.0
        %1573 = vmatprep.subr.mxu0 0.0
        %1574 = vmatpush1.msra.mxu0 0.0
        %1575 = vmatprep.subr.mxu0 0.0
        %1576 = vmatpush1.msra.mxu0 0.0
        %1577 = vmatprep.subr.mxu0 0.0
        %1578 = vmatpush1.msra.mxu0 0.0
        %1579 = vmatprep.subr.mxu0 0.0
        %1580 = vmatpush1.msra.mxu0 0.0
        %1581 = vmatprep.subr.mxu0 0.0
        %1582 = vmatpush1.msra.mxu0 0.0
        %1583 = vmatprep.subr.mxu0 0.0
        %1584 = vmatpush1.msra.mxu0 0.0
        %1585 = vmatprep.subr.mxu0 0.0
        %1586 = vmatpush1.msra.mxu0 0.0
        %1587 = vmatprep.subr.mxu0 0.0
        %1588 = vmatpush1.msra.mxu0 0.0
        %1589 = vmatprep.mubr.f32.mxu0 0.0
        %v1590 = vand.u32 %v1324, 4294901760
        %1591 = vmatmul.mubr.f32.gmra.mrb[0].mxu0 %v1590
        %v1592 = vpop.f32.mrb[0].mxu0
        %v1593 = vadd.f32 %v1432, %v1592
        %v1594 = vpop.f32.mrb[0].mxu0
        %1595 = vmatprep.mubr.f32.mxu0 0.0
        %v1596 = vand.u32 %v1325, 4294901760
        %1597 = vmatmul.mubr.f32.gmra.mrb[0].mxu0 %v1596
        %v1598 = vpop.f32.mrb[0].mxu0
        %v1599 = vadd.f32 %v1442, %v1598
        %v1600 = vpop.f32.mrb[0].mxu0
        %1601 = vdwg.mxu0
        %1602 = vmatprep.subr.mxu0 0.0
        %v1603 = vand.u32 %v1328, 4294901760
        %v1604 = vsub.f32 %v1328, %v1603
        %1605 = vmatpush1.msra.mxu0 %v1604
        %1606 = vmatprep.subr.mxu0 0.0
        %v1607 = vand.u32 %v1329, 4294901760
        %v1608 = vsub.f32 %v1329, %v1607
        %1609 = vmatpush1.msra.mxu0 %v1608
        %1610 = vmatprep.subr.mxu0 0.0
        %v1611 = vand.u32 %v1330, 4294901760
        %v1612 = vsub.f32 %v1330, %v1611
        %1613 = vmatpush1.msra.mxu0 %v1612
        %1614 = vmatprep.subr.mxu0 0.0
        %v1615 = vand.u32 %v1331, 4294901760
        %v1616 = vsub.f32 %v1331, %v1615
        %1617 = vmatpush1.msra.mxu0 %v1616
        %1618 = vmatprep.subr.mxu0 0.0
        %v1619 = vand.u32 %v1332, 4294901760
        %v1620 = vsub.f32 %v1332, %v1619
        %1621 = vmatpush1.msra.mxu0 %v1620
        %1622 = vmatprep.subr.mxu0 0.0
        %v1623 = vand.u32 %v1333, 4294901760
        %v1624 = vsub.f32 %v1333, %v1623
        %1625 = vmatpush1.msra.mxu0 %v1624
        %1626 = vmatprep.subr.mxu0 0.0
        %v1627 = vand.u32 %v1334, 4294901760
        %v1628 = vsub.f32 %v1334, %v1627
        %1629 = vmatpush1.msra.mxu0 %v1628
        %1630 = vmatprep.subr.mxu0 0.0
        %v1631 = vand.u32 %v1335, 4294901760
        %v1632 = vsub.f32 %v1335, %v1631
        %1633 = vmatpush1.msra.mxu0 %v1632
        %1634 = vmatprep.subr.mxu0 0.0
        %v1635 = vand.u32 %v1336, 4294901760
        %v1636 = vsub.f32 %v1336, %v1635
        %1637 = vmatpush1.msra.mxu0 %v1636
        %1638 = vmatprep.subr.mxu0 0.0
        %v1639 = vand.u32 %v1337, 4294901760
        %v1640 = vsub.f32 %v1337, %v1639
        %1641 = vmatpush1.msra.mxu0 %v1640
        %1642 = vmatprep.subr.mxu0 0.0
        %v1643 = vand.u32 %v1338, 4294901760
        %v1644 = vsub.f32 %v1338, %v1643
        %1645 = vmatpush1.msra.mxu0 %v1644
        %1646 = vmatprep.subr.mxu0 0.0
        %v1647 = vand.u32 %v1339, 4294901760
        %v1648 = vsub.f32 %v1339, %v1647
        %1649 = vmatpush1.msra.mxu0 %v1648
        %1650 = vmatprep.subr.mxu0 0.0
        %v1651 = vand.u32 %v1340, 4294901760
        %v1652 = vsub.f32 %v1340, %v1651
        %1653 = vmatpush1.msra.mxu0 %v1652
        %1654 = vmatprep.subr.mxu0 0.0
        %v1655 = vand.u32 %v1341, 4294901760
        %v1656 = vsub.f32 %v1341, %v1655
        %1657 = vmatpush1.msra.mxu0 %v1656
        %1658 = vmatprep.subr.mxu0 0.0
        %v1659 = vand.u32 %v1342, 4294901760
        %v1660 = vsub.f32 %v1342, %v1659
        %1661 = vmatpush1.msra.mxu0 %v1660
        %1662 = vmatprep.subr.mxu0 0.0
        %v1663 = vand.u32 %v1343, 4294901760
        %v1664 = vsub.f32 %v1343, %v1663
        %1665 = vmatpush1.msra.mxu0 %v1664
        %1666 = vmatprep.subr.mxu0 0.0
        %1667 = vmatpush1.msra.mxu0 0.0
        %1668 = vmatprep.subr.mxu0 0.0
        %1669 = vmatpush1.msra.mxu0 0.0
        %1670 = vmatprep.subr.mxu0 0.0
        %1671 = vmatpush1.msra.mxu0 0.0
        %1672 = vmatprep.subr.mxu0 0.0
        %1673 = vmatpush1.msra.mxu0 0.0
        %1674 = vmatprep.subr.mxu0 0.0
        %1675 = vmatpush1.msra.mxu0 0.0
        %1676 = vmatprep.subr.mxu0 0.0
        %1677 = vmatpush1.msra.mxu0 0.0
        %1678 = vmatprep.subr.mxu0 0.0
        %1679 = vmatpush1.msra.mxu0 0.0
        %1680 = vmatprep.subr.mxu0 0.0
        %1681 = vmatpush1.msra.mxu0 0.0
        %1682 = vmatprep.subr.mxu0 0.0
        %1683 = vmatpush1.msra.mxu0 0.0
        %1684 = vmatprep.subr.mxu0 0.0
        %1685 = vmatpush1.msra.mxu0 0.0
        %1686 = vmatprep.subr.mxu0 0.0
        %1687 = vmatpush1.msra.mxu0 0.0
        %1688 = vmatprep.subr.mxu0 0.0
        %1689 = vmatpush1.msra.mxu0 0.0
        %1690 = vmatprep.subr.mxu0 0.0
        %1691 = vmatpush1.msra.mxu0 0.0
        %1692 = vmatprep.subr.mxu0 0.0
        %1693 = vmatpush1.msra.mxu0 0.0
        %1694 = vmatprep.subr.mxu0 0.0
        %1695 = vmatpush1.msra.mxu0 0.0
        %1696 = vmatprep.subr.mxu0 0.0
        %1697 = vmatpush1.msra.mxu0 0.0
        %1698 = vmatprep.mubr.f32.mxu0 0.0
        %v1699 = vand.u32 %v1324, 4294901760
        %v1700 = vsub.f32 %v1324, %v1699
        %1701 = vmatmul.mubr.f32.gmra.mrb[0].mxu0 %v1700
        %v1702 = vpop.f32.mrb[0].mxu0
        %v1703 = vadd.f32 %v1593, %v1702
        %v1704 = vpop.f32.mrb[0].mxu0
        %1705 = vmatprep.mubr.f32.mxu0 0.0
        %v1706 = vand.u32 %v1325, 4294901760
        %v1707 = vsub.f32 %v1325, %v1706
        %1708 = vmatmul.mubr.f32.gmra.mrb[0].mxu0 %v1707
        %v1709 = vpop.f32.mrb[0].mxu0
        %v1710 = vadd.f32 %v1599, %v1709
        %v1711 = vpop.f32.mrb[0].mxu0
        %1712 = vdwg.mxu0
        %1713 = vmatprep.subr.mxu0 0.0
        %v1714 = vand.u32 %v1328, 4294901760
        %1715 = vmatpush1.msra.mxu0 %v1714
        %1716 = vmatprep.subr.mxu0 0.0
        %v1717 = vand.u32 %v1329, 4294901760
        %1718 = vmatpush1.msra.mxu0 %v1717
        %1719 = vmatprep.subr.mxu0 0.0
        %v1720 = vand.u32 %v1330, 4294901760
        %1721 = vmatpush1.msra.mxu0 %v1720
        %1722 = vmatprep.subr.mxu0 0.0
        %v1723 = vand.u32 %v1331, 4294901760
        %1724 = vmatpush1.msra.mxu0 %v1723
        %1725 = vmatprep.subr.mxu0 0.0
        %v1726 = vand.u32 %v1332, 4294901760
        %1727 = vmatpush1.msra.mxu0 %v1726
        %1728 = vmatprep.subr.mxu0 0.0
        %v1729 = vand.u32 %v1333, 4294901760
        %1730 = vmatpush1.msra.mxu0 %v1729
        %1731 = vmatprep.subr.mxu0 0.0
        %v1732 = vand.u32 %v1334, 4294901760
        %1733 = vmatpush1.msra.mxu0 %v1732
        %1734 = vmatprep.subr.mxu0 0.0
        %v1735 = vand.u32 %v1335, 4294901760
        %1736 = vmatpush1.msra.mxu0 %v1735
        %1737 = vmatprep.subr.mxu0 0.0
        %v1738 = vand.u32 %v1336, 4294901760
        %1739 = vmatpush1.msra.mxu0 %v1738
        %1740 = vmatprep.subr.mxu0 0.0
        %v1741 = vand.u32 %v1337, 4294901760
        %1742 = vmatpush1.msra.mxu0 %v1741
        %1743 = vmatprep.subr.mxu0 0.0
        %v1744 = vand.u32 %v1338, 4294901760
        %1745 = vmatpush1.msra.mxu0 %v1744
        %1746 = vmatprep.subr.mxu0 0.0
        %v1747 = vand.u32 %v1339, 4294901760
        %1748 = vmatpush1.msra.mxu0 %v1747
        %1749 = vmatprep.subr.mxu0 0.0
        %v1750 = vand.u32 %v1340, 4294901760
        %1751 = vmatpush1.msra.mxu0 %v1750
        %1752 = vmatprep.subr.mxu0 0.0
        %v1753 = vand.u32 %v1341, 4294901760
        %1754 = vmatpush1.msra.mxu0 %v1753
        %1755 = vmatprep.subr.mxu0 0.0
        %v1756 = vand.u32 %v1342, 4294901760
        %1757 = vmatpush1.msra.mxu0 %v1756
        %1758 = vmatprep.subr.mxu0 0.0
        %v1759 = vand.u32 %v1343, 4294901760
        %1760 = vmatpush1.msra.mxu0 %v1759
        %1761 = vmatprep.subr.mxu0 0.0
        %1762 = vmatpush1.msra.mxu0 0.0
        %1763 = vmatprep.subr.mxu0 0.0
        %1764 = vmatpush1.msra.mxu0 0.0
        %1765 = vmatprep.subr.mxu0 0.0
        %1766 = vmatpush1.msra.mxu0 0.0
        %1767 = vmatprep.subr.mxu0 0.0
        %1768 = vmatpush1.msra.mxu0 0.0
        %1769 = vmatprep.subr.mxu0 0.0
        %1770 = vmatpush1.msra.mxu0 0.0
        %1771 = vmatprep.subr.mxu0 0.0
        %1772 = vmatpush1.msra.mxu0 0.0
        %1773 = vmatprep.subr.mxu0 0.0
        %1774 = vmatpush1.msra.mxu0 0.0
        %1775 = vmatprep.subr.mxu0 0.0
        %1776 = vmatpush1.msra.mxu0 0.0
        %1777 = vmatprep.subr.mxu0 0.0
        %1778 = vmatpush1.msra.mxu0 0.0
        %1779 = vmatprep.subr.mxu0 0.0
        %1780 = vmatpush1.msra.mxu0 0.0
        %1781 = vmatprep.subr.mxu0 0.0
        %1782 = vmatpush1.msra.mxu0 0.0
        %1783 = vmatprep.subr.mxu0 0.0
        %1784 = vmatpush1.msra.mxu0 0.0
        %1785 = vmatprep.subr.mxu0 0.0
        %1786 = vmatpush1.msra.mxu0 0.0
        %1787 = vmatprep.subr.mxu0 0.0
        %1788 = vmatpush1.msra.mxu0 0.0
        %1789 = vmatprep.subr.mxu0 0.0
        %1790 = vmatpush1.msra.mxu0 0.0
        %1791 = vmatprep.subr.mxu0 0.0
        %1792 = vmatpush1.msra.mxu0 0.0
        %1793 = vmatprep.mubr.f32.mxu0 0.0
        %v1794 = vand.u32 %v1324, 4294901760
        %v1795 = vsub.f32 %v1324, %v1794
        %v1796 = vand.u32 %v1795, 4294901760
        %1797 = vmatmul.mubr.f32.gmra.mrb[0].mxu0 %v1796
        %v1798 = vpop.f32.mrb[0].mxu0
        %v1799 = vadd.f32 %v1703, %v1798
        %v1800 = vpop.f32.mrb[0].mxu0
        %1801 = vmatprep.mubr.f32.mxu0 0.0
        %v1802 = vand.u32 %v1325, 4294901760
        %v1803 = vsub.f32 %v1325, %v1802
        %v1804 = vand.u32 %v1803, 4294901760
        %1805 = vmatmul.mubr.f32.gmra.mrb[0].mxu0 %v1804
        %v1806 = vpop.f32.mrb[0].mxu0
        %v1807 = vadd.f32 %v1710, %v1806
        %v1808 = vpop.f32.mrb[0].mxu0
        %1809 = vdwg.mxu0
        %1810 = vmatprep.subr.mxu0 0.0
        %v1811 = vand.u32 %v1328, 4294901760
        %v1812 = vsub.f32 %v1328, %v1811
        %v1813 = vand.u32 %v1812, 4294901760
        %1814 = vmatpush1.msra.mxu0 %v1813
        %1815 = vmatprep.subr.mxu0 0.0
        %v1816 = vand.u32 %v1329, 4294901760
        %v1817 = vsub.f32 %v1329, %v1816
        %v1818 = vand.u32 %v1817, 4294901760
        %1819 = vmatpush1.msra.mxu0 %v1818
        %1820 = vmatprep.subr.mxu0 0.0
        %v1821 = vand.u32 %v1330, 4294901760
        %v1822 = vsub.f32 %v1330, %v1821
        %v1823 = vand.u32 %v1822, 4294901760
        %1824 = vmatpush1.msra.mxu0 %v1823
        %1825 = vmatprep.subr.mxu0 0.0
        %v1826 = vand.u32 %v1331, 4294901760
        %v1827 = vsub.f32 %v1331, %v1826
        %v1828 = vand.u32 %v1827, 4294901760
        %1829 = vmatpush1.msra.mxu0 %v1828
        %1830 = vmatprep.subr.mxu0 0.0
        %v1831 = vand.u32 %v1332, 4294901760
        %v1832 = vsub.f32 %v1332, %v1831
        %v1833 = vand.u32 %v1832, 4294901760
        %1834 = vmatpush1.msra.mxu0 %v1833
        %1835 = vmatprep.subr.mxu0 0.0
        %v1836 = vand.u32 %v1333, 4294901760
        %v1837 = vsub.f32 %v1333, %v1836
        %v1838 = vand.u32 %v1837, 4294901760
        %1839 = vmatpush1.msra.mxu0 %v1838
        %1840 = vmatprep.subr.mxu0 0.0
        %v1841 = vand.u32 %v1334, 4294901760
        %v1842 = vsub.f32 %v1334, %v1841
        %v1843 = vand.u32 %v1842, 4294901760
        %1844 = vmatpush1.msra.mxu0 %v1843
        %1845 = vmatprep.subr.mxu0 0.0
        %v1846 = vand.u32 %v1335, 4294901760
        %v1847 = vsub.f32 %v1335, %v1846
        %v1848 = vand.u32 %v1847, 4294901760
        %1849 = vmatpush1.msra.mxu0 %v1848
        %1850 = vmatprep.subr.mxu0 0.0
        %v1851 = vand.u32 %v1336, 4294901760
        %v1852 = vsub.f32 %v1336, %v1851
        %v1853 = vand.u32 %v1852, 4294901760
        %1854 = vmatpush1.msra.mxu0 %v1853
        %1855 = vmatprep.subr.mxu0 0.0
        %v1856 = vand.u32 %v1337, 4294901760
        %v1857 = vsub.f32 %v1337, %v1856
        %v1858 = vand.u32 %v1857, 4294901760
        %1859 = vmatpush1.msra.mxu0 %v1858
        %1860 = vmatprep.subr.mxu0 0.0
        %v1861 = vand.u32 %v1338, 4294901760
        %v1862 = vsub.f32 %v1338, %v1861
        %v1863 = vand.u32 %v1862, 4294901760
        %1864 = vmatpush1.msra.mxu0 %v1863
        %1865 = vmatprep.subr.mxu0 0.0
        %v1866 = vand.u32 %v1339, 4294901760
        %v1867 = vsub.f32 %v1339, %v1866
        %v1868 = vand.u32 %v1867, 4294901760
        %1869 = vmatpush1.msra.mxu0 %v1868
        %1870 = vmatprep.subr.mxu0 0.0
        %v1871 = vand.u32 %v1340, 4294901760
        %v1872 = vsub.f32 %v1340, %v1871
        %v1873 = vand.u32 %v1872, 4294901760
        %1874 = vmatpush1.msra.mxu0 %v1873
        %1875 = vmatprep.subr.mxu0 0.0
        %v1876 = vand.u32 %v1341, 4294901760
        %v1877 = vsub.f32 %v1341, %v1876
        %v1878 = vand.u32 %v1877, 4294901760
        %1879 = vmatpush1.msra.mxu0 %v1878
        %1880 = vmatprep.subr.mxu0 0.0
        %v1881 = vand.u32 %v1342, 4294901760
        %v1882 = vsub.f32 %v1342, %v1881
        %v1883 = vand.u32 %v1882, 4294901760
        %1884 = vmatpush1.msra.mxu0 %v1883
        %1885 = vmatprep.subr.mxu0 0.0
        %v1886 = vand.u32 %v1343, 4294901760
        %v1887 = vsub.f32 %v1343, %v1886
        %v1888 = vand.u32 %v1887, 4294901760
        %1889 = vmatpush1.msra.mxu0 %v1888
        %1890 = vmatprep.subr.mxu0 0.0
        %1891 = vmatpush1.msra.mxu0 0.0
        %1892 = vmatprep.subr.mxu0 0.0
        %1893 = vmatpush1.msra.mxu0 0.0
        %1894 = vmatprep.subr.mxu0 0.0
        %1895 = vmatpush1.msra.mxu0 0.0
        %1896 = vmatprep.subr.mxu0 0.0
        %1897 = vmatpush1.msra.mxu0 0.0
        %1898 = vmatprep.subr.mxu0 0.0
        %1899 = vmatpush1.msra.mxu0 0.0
        %1900 = vmatprep.subr.mxu0 0.0
        %1901 = vmatpush1.msra.mxu0 0.0
        %1902 = vmatprep.subr.mxu0 0.0
        %1903 = vmatpush1.msra.mxu0 0.0
        %1904 = vmatprep.subr.mxu0 0.0
        %1905 = vmatpush1.msra.mxu0 0.0
        %1906 = vmatprep.subr.mxu0 0.0
        %1907 = vmatpush1.msra.mxu0 0.0
        %1908 = vmatprep.subr.mxu0 0.0
        %1909 = vmatpush1.msra.mxu0 0.0
        %1910 = vmatprep.subr.mxu0 0.0
        %1911 = vmatpush1.msra.mxu0 0.0
        %1912 = vmatprep.subr.mxu0 0.0
        %1913 = vmatpush1.msra.mxu0 0.0
        %1914 = vmatprep.subr.mxu0 0.0
        %1915 = vmatpush1.msra.mxu0 0.0
        %1916 = vmatprep.subr.mxu0 0.0
        %1917 = vmatpush1.msra.mxu0 0.0
        %1918 = vmatprep.subr.mxu0 0.0
        %1919 = vmatpush1.msra.mxu0 0.0
        %1920 = vmatprep.subr.mxu0 0.0
        %1921 = vmatpush1.msra.mxu0 0.0
        %1922 = vmatprep.mubr.f32.mxu0 0.0
        %v1923 = vand.u32 %v1324, 4294901760
        %1924 = vmatmul.mubr.f32.gmra.mrb[0].mxu0 %v1923
        %v1925 = vpop.f32.mrb[0].mxu0
        %v1926 = vadd.f32 %v1799, %v1925
        %v1927 = vpop.f32.mrb[0].mxu0
        %1928 = vmatprep.mubr.f32.mxu0 0.0
        %v1929 = vand.u32 %v1325, 4294901760
        %1930 = vmatmul.mubr.f32.gmra.mrb[0].mxu0 %v1929
        %v1931 = vpop.f32.mrb[0].mxu0
        %v1932 = vadd.f32 %v1807, %v1931
        %v1933 = vpop.f32.mrb[0].mxu0
        %1934 = vdwg.mxu0
        %1935 = vmatprep.subr.mxu0 0.0
        %v1936 = vand.u32 %v1328, 4294901760
        %1937 = vmatpush1.msra.mxu0 %v1936
        %1938 = vmatprep.subr.mxu0 0.0
        %v1939 = vand.u32 %v1329, 4294901760
        %1940 = vmatpush1.msra.mxu0 %v1939
        %1941 = vmatprep.subr.mxu0 0.0
        %v1942 = vand.u32 %v1330, 4294901760
        %1943 = vmatpush1.msra.mxu0 %v1942
        %1944 = vmatprep.subr.mxu0 0.0
        %v1945 = vand.u32 %v1331, 4294901760
        %1946 = vmatpush1.msra.mxu0 %v1945
        %1947 = vmatprep.subr.mxu0 0.0
        %v1948 = vand.u32 %v1332, 4294901760
        %1949 = vmatpush1.msra.mxu0 %v1948
        %1950 = vmatprep.subr.mxu0 0.0
        %v1951 = vand.u32 %v1333, 4294901760
        %1952 = vmatpush1.msra.mxu0 %v1951
        %1953 = vmatprep.subr.mxu0 0.0
        %v1954 = vand.u32 %v1334, 4294901760
        %1955 = vmatpush1.msra.mxu0 %v1954
        %1956 = vmatprep.subr.mxu0 0.0
        %v1957 = vand.u32 %v1335, 4294901760
        %1958 = vmatpush1.msra.mxu0 %v1957
        %1959 = vmatprep.subr.mxu0 0.0
        %v1960 = vand.u32 %v1336, 4294901760
        %1961 = vmatpush1.msra.mxu0 %v1960
        %1962 = vmatprep.subr.mxu0 0.0
        %v1963 = vand.u32 %v1337, 4294901760
        %1964 = vmatpush1.msra.mxu0 %v1963
        %1965 = vmatprep.subr.mxu0 0.0
        %v1966 = vand.u32 %v1338, 4294901760
        %1967 = vmatpush1.msra.mxu0 %v1966
        %1968 = vmatprep.subr.mxu0 0.0
        %v1969 = vand.u32 %v1339, 4294901760
        %1970 = vmatpush1.msra.mxu0 %v1969
        %1971 = vmatprep.subr.mxu0 0.0
        %v1972 = vand.u32 %v1340, 4294901760
        %1973 = vmatpush1.msra.mxu0 %v1972
        %1974 = vmatprep.subr.mxu0 0.0
        %v1975 = vand.u32 %v1341, 4294901760
        %1976 = vmatpush1.msra.mxu0 %v1975
        %1977 = vmatprep.subr.mxu0 0.0
        %v1978 = vand.u32 %v1342, 4294901760
        %1979 = vmatpush1.msra.mxu0 %v1978
        %1980 = vmatprep.subr.mxu0 0.0
        %v1981 = vand.u32 %v1343, 4294901760
        %1982 = vmatpush1.msra.mxu0 %v1981
        %1983 = vmatprep.subr.mxu0 0.0
        %1984 = vmatpush1.msra.mxu0 0.0
        %1985 = vmatprep.subr.mxu0 0.0
        %1986 = vmatpush1.msra.mxu0 0.0
        %1987 = vmatprep.subr.mxu0 0.0
        %1988 = vmatpush1.msra.mxu0 0.0
        %1989 = vmatprep.subr.mxu0 0.0
        %1990 = vmatpush1.msra.mxu0 0.0
        %1991 = vmatprep.subr.mxu0 0.0
        %1992 = vmatpush1.msra.mxu0 0.0
        %1993 = vmatprep.subr.mxu0 0.0
        %1994 = vmatpush1.msra.mxu0 0.0
        %1995 = vmatprep.subr.mxu0 0.0
        %1996 = vmatpush1.msra.mxu0 0.0
        %1997 = vmatprep.subr.mxu0 0.0
        %1998 = vmatpush1.msra.mxu0 0.0
        %1999 = vmatprep.subr.mxu0 0.0
        %2000 = vmatpush1.msra.mxu0 0.0
        %2001 = vmatprep.subr.mxu0 0.0
        %2002 = vmatpush1.msra.mxu0 0.0
        %2003 = vmatprep.subr.mxu0 0.0
        %2004 = vmatpush1.msra.mxu0 0.0
        %2005 = vmatprep.subr.mxu0 0.0
        %2006 = vmatpush1.msra.mxu0 0.0
        %2007 = vmatprep.subr.mxu0 0.0
        %2008 = vmatpush1.msra.mxu0 0.0
        %2009 = vmatprep.subr.mxu0 0.0
        %2010 = vmatpush1.msra.mxu0 0.0
        %2011 = vmatprep.subr.mxu0 0.0
        %2012 = vmatpush1.msra.mxu0 0.0
        %2013 = vmatprep.subr.mxu0 0.0
        %2014 = vmatpush1.msra.mxu0 0.0
        %2015 = vmatprep.mubr.f32.mxu0 0.0
        %v2016 = vand.u32 %v1324, 4294901760
        %2017 = vmatmul.mubr.f32.gmra.mrb[0].mxu0 %v2016
        %v2018 = vpop.f32.mrb[0].mxu0
        %v2019 = vadd.f32 %v1926, %v2018
        %v2020 = vpop.f32.mrb[0].mxu0
        %2021 = vmatprep.mubr.f32.mxu0 0.0
        %v2022 = vand.u32 %v1325, 4294901760
        %2023 = vmatmul.mubr.f32.gmra.mrb[0].mxu0 %v2022
        %v2024 = vpop.f32.mrb[0].mxu0
        %v2025 = vadd.f32 %v1932, %v2024
        %v2026 = vpop.f32.mrb[0].mxu0
        %2027 = vdwg.mxu0
        %v2028 = vadd.f32 %v1326, %v2019
        %v2029 = vadd.f32 %v1327, %v2025
        %2030 = vst [vmem:[%s379] sm:$0xff] %v2028
        %2031 = vst [vmem:[%s379 + $0x8] sm:$0xff] %v2029
        %v2032 = vld [vmem:[#allocation2] sm:$0xff]
        %v2033 = vld [vmem:[#allocation2 + $0x8] sm:$0xff]
        %v2034 = vmul.f32 %v1324, %v1324
        %v2035 = vmul.f32 %v1325, %v1325
        %2036 = vadd.xlane.f32.xlu0 %v2034
        %v2037 = vpop.xlane.xlu0 %2036
        %2038 = vadd.xlane.f32.xlu0 %v2035
        %v2039 = vpop.xlane.xlu0 %2038
        %v2040 = vadd.f32 %v2032, %v2037
        %v2041 = vadd.f32 %v2033, %v2039
        %vm2042 = vcmask 7168
        %2043 = vst.msk [vmem:[#allocation2] sm:$0xff] %vm2042, %v2040
        %2044 = vst.msk [vmem:[#allocation2 + $0x8] sm:$0xff] %vm2042, %v2041
        %p2045 = scmp.eq.s32.totalorder %s31, 2
        // Predicated region
        $region61: #{tpu_custom_call.1} parent=43 // pred_check
          %p2046 = pneg %p2045
        $region62: #{tpu_custom_call.1} parent=43 // pred_check_branch
          %2048 = sbr.rel (%p2046) target = $region64
        $region63: #{tpu_custom_call.1} parent=43 // pred_region
          %v2049 = vld [vmem:[#allocation2] sm:$0xff]
          %v2050 = vld [vmem:[#allocation2 + $0x8] sm:$0xff]
          %v2051 = vrsqrt.pop %v2049
          %v2052 = vmul.f32 %v2049, %v2051
          %vm2053 = vcmp.eq.f32.partialorder %v2049, inf
          %v2054 = vsel %vm2053, %v2049, %v2052
          %vm2055 = vcmp.eq.f32.partialorder %v2049, 0.0
          %v2056 = vand.u32 %v2049, 2147483648
          %v2057 = vsel %vm2055, %v2056, %v2054
          %v2058 = vrsqrt.pop %v2050
          %v2059 = vmul.f32 %v2050, %v2058
          %vm2060 = vcmp.eq.f32.partialorder %v2050, inf
          %v2061 = vsel %vm2060, %v2050, %v2059
          %vm2062 = vcmp.eq.f32.partialorder %v2050, 0.0
          %v2063 = vand.u32 %v2050, 2147483648
          %v2064 = vsel %vm2062, %v2063, %v2061
          %v2065 = vld [vmem:[%s5] sm:$0x1]
          %2067 = vset.pattern.permute.xlu0 0
          %2068 = vperm.xlu0 %2067, %v2057
          %v2069 = vpop.permute.xlu0 %2068
          %2072 = vset.pattern.permute.xlu0 0
          %2073 = vperm.xlu0 %2072, %v2064
          %v2074 = vpop.permute.xlu0 %2073
          %v2077 = vlaneseq
          %v2078 = vshrl.u32 %v2077, 7
          %v2079 = vsub.s32 0, %v2078
          %v2080 = vrot.slane %v2065, %v2079
          %v2082 = vmul.f32 %v2069, %v2080
          %v2083 = vmul.f32 %v2074, %v2080
          %v2084 = vmax.f32 %v2082, 1e-08
          %v2085 = vmax.f32 %v2083, 1e-08
          %v2086 = vld [vmem:[%s379] sm:$0xff]
          %v2087 = vld [vmem:[%s379 + $0x8] sm:$0xff]
          %v2088 = vrcp.pop %v2084
          %v2089 = vmul.f32 %v2086, %v2088
          %v2090 = vrcp.pop %v2085
          %v2091 = vmul.f32 %v2087, %v2090
          %2092 = vst [vmem:[%s379] sm:$0xff] %v2089
          %2093 = vst [vmem:[%s379 + $0x8] sm:$0xff] %v2091
        $region64: #{tpu_custom_call.1} parent=43 // pred_fallthru
          _
        %s2094 = sand.u32 %s197, 1
        %s2095 = scalar_lea.sflag [#allocation5], %s2094
        %s2096 = sand.u32 %s197, 1
        %s2097 = smul.addr %s2096, 16
        %s2098 = scalar_lea.vmem [#allocation9], %s2097
        // Predicated region
        $region65: #{tpu_custom_call.1} parent=43 // pred_check
          %p2099 = pneg %p207
        $region66: #{tpu_custom_call.1} parent=43 // pred_check_branch
          %2101 = sbr.rel (%p2099) target = $region68
        $region67: #{tpu_custom_call.1} parent=43 // pred_region
          %s2102 = smul.u32 2, %s30
          %s2104 = ssub.s32 256, 256
          %2105 = vsyncadd %s2095, %s2104
          %s2106 = smul.addr %s2102, 128
          %s2107 = scalar_lea.hbm %s6, %s2106
          %s2108 = sshll.u32 %s2098, 4
          %s2109 = int_to_ptr.vmem [resolvable:$true] %s2108
          %2114 = dma.vmem_to_hbm [thread:$0]  %s2109, 256, %s2107, %s2095, 128, 128, 8
        $region68: #{tpu_custom_call.1} parent=43 // pred_fallthru
          _
      $region44: #{tpu_custom_call.1} parent=5 // pred_fallthru
        _
      %p2115 = scmp.le.s32.totalorder 2, %s21
      // Predicated region
      $region69: #{tpu_custom_call.1} parent=5 // pred_check
        %p2116 = pneg %p2115
      $region70: #{tpu_custom_call.1} parent=5 // pred_check_branch
        %2118 = sbr.rel (%p2116) target = $region72
      $region71: #{tpu_custom_call.1} parent=5 // pred_region
        %s2119 = ssub.s32 %s21, 2
        // Predicated region
        $region73: #{tpu_custom_call.1} parent=71 // pred_check
          %p2120 = pneg %p213
        $region74: #{tpu_custom_call.1} parent=71 // pred_check_branch
          %2122 = sbr.rel (%p2120) target = $region76
        $region75: #{tpu_custom_call.1} parent=71 // pred_region
          %s2123 = sand.u32 %s198, 1
          %s2124 = scalar_lea.sflag [#allocation5], %s2123
          %s2125 = sand.u32 %s198, 1
          %s2126 = smul.addr %s2125, 16
          %s2127 = scalar_lea.vmem [#allocation9], %s2126
          %2128 = dma.done %s2124, 256
        $region76: #{tpu_custom_call.1} parent=71 // pred_fallthru
          _
      $region72: #{tpu_custom_call.1} parent=5 // pred_fallthru
        _
    $region6: #{tpu_custom_call.1} parent=1 // loop_footer
      %s25 = sadd.s32 1, %s21
    $region7: #{tpu_custom_call.1} parent=1 // loop_footer_branch
      %20 = sbr.rel target = $region3
    $region8: #{tpu_custom_call.1} parent=1 // loop_exit
      _
    %2129 = vsyncpa [#allocation4], 1
    %s2130 = scalar_lea.sflag [#allocation4], 1
    %2131 = vsyncpa %s2130, 1
    %2132 = vsyncpa [#allocation7], 1
    %s2133 = scalar_lea.sflag [#allocation7], 1
    %2134 = vsyncpa %s2133, 1
    %2135 = vsyncpa [#allocation5], 1
    %s2136 = scalar_lea.sflag [#allocation5], 1
    %2137 = vsyncpa %s2136, 1

</llo_original>
